<compile_context>
chip_gen: v5e
topology: v5e:2x2
jax: 0.10.0
libtpu: 0.0.40
codegen_flags: <defaults>
</compile_context>

<pallas_src>
import functools

import jax
import jax.numpy as jnp
from jax.experimental import pallas as pl
from jax.experimental.pallas import tpu as pltpu


def _fused_kernel(p1_ref, w1_ref, b1_ref, w2_ref, b2_ref, w3_ref, b3_ref,
                  o_ref, *, NB, Ho2, Wo2, Cin, Ch, Cout):
    """NB batch samples per grid step; all intermediates stay in VMEM.

    p1_ref : (NB, 9*Ho2*Wo2, 9*Cin) bf16  conv1 im2col patches, rows ordered
                                          (n, q, r, ki, kj) -- only the
                                          positions the stride-4 conv2 reads.
    w*_ref : (9*Cin_l, Cout_l)      bf16  im2col-flattened HWIO weights
    b*_ref : (1, Cout_l)            f32
    o_ref  : (1, NB*Ho2*Wo2, Cout)  f32
    """
    f32 = jnp.float32
    bf16 = jnp.bfloat16
    R2 = NB * Ho2 * Wo2            # rows of the conv2 / conv3 GEMMs
    R1 = 9 * R2                    # rows of the conv1 GEMM (needed positions only)

    # ---- conv1: 3x3 / stride 1 / pad 1, ReLU --------------------------------
    p1 = p1_ref[...].reshape(R1, 9 * Cin)                          # bf16 patches
    h1 = jax.lax.dot_general(p1, w1_ref[...], (((1,), (0,)), ((), ())),
                             preferred_element_type=f32)           # (R1, Ch)
    h1 = jnp.maximum(h1 + b1_ref[...], 0.0)                        # f32 epilogue

    # ---- conv2: 3x3 / stride 4 / pad 0, ReLU --------------------------------
    # h1 rows are (n, q, r, ki, kj): the 9 conv1 outputs feeding conv2 output
    # pixel (q, r) are contiguous.  Regroup rows (lane dim untouched) and
    # 3+3 lane-concat them into the (R2, 9*Ch) patch matrix.
    h1j = h1.reshape(R2 * 3, 3, Ch)                                # rows (n,q,r,ki)
    pj = jnp.concatenate([h1j[:, j, :] for j in range(3)], axis=-1)   # (R2*3, 3*Ch)
    pji = pj.reshape(R2, 3, 3 * Ch)                                # rows (n,q,r)
    p2 = jnp.concatenate([pji[:, i, :] for i in range(3)], axis=-1)   # (R2, 9*Ch)
    h2 = jax.lax.dot_general(p2.astype(bf16), w2_ref[...],
                             (((1,), (0,)), ((), ())),
                             preferred_element_type=f32)           # (R2, Ch)
    h2 = jnp.maximum(h2 + b2_ref[...], 0.0)

    # ---- conv3: 3x3 / stride 1 / pad 1, LeakyReLU(0.01) ----------------------
    # Zero ring built on the value (no scratch zero/store/reload round-trip),
    # then a 3+3 factored im2col (6 shifts instead of 9).
    h2s = h2.reshape(NB, Ho2, Wo2, Ch)
    zw = jnp.zeros((NB, Ho2, 1, Ch), f32)
    zh = jnp.zeros((NB, 1, Wo2 + 2, Ch), f32)
    h2p = jnp.concatenate([zw, h2s, zw], axis=2)                   # pad W
    h2p = jnp.concatenate([zh, h2p, zh], axis=1)                   # pad H
    h2w = jnp.concatenate([h2p[:, :, j:j + Wo2, :] for j in range(3)], axis=-1)
    p3 = jnp.concatenate([h2w[:, i:i + Ho2, :, :] for i in range(3)], axis=-1)
    p3 = p3.reshape(R2, 9 * Ch).astype(bf16)                       # (R2, 9*Ch)
    y = jax.lax.dot_general(p3, w3_ref[...], (((1,), (0,)), ((), ())),
                            preferred_element_type=f32)            # (R2, Cout)
    y = y + b3_ref[...]
    y = jnp.where(y >= 0.0, y, 0.01 * y)                           # LeakyReLU, f32

    o_ref[...] = y.reshape(1, R2, Cout)


def _conv1_patches(xp, H, W, Cin, Ho2, Wo2):
    """conv1 im2col patches, restricted to the positions conv2 reads.

    Returns (N, 9*Ho2*Wo2, 9*Cin), rows ordered (n, q, r, ki, kj): the row is
    the 3x3xCin padded-input window of conv1-output position (4q+ki, 4r+kj),
    flattened (di, dj, c) to match the HWIO weight flattening.
    """
    N = xp.shape[0]
    taps = []
    for di in range(3):
        for dj in range(3):
            t = xp[:, di:di + H, dj:dj + W, :]                     # tap value at (h, w)
            t = t.reshape(N, Ho2, 4, Wo2, 4, Cin)[:, :, :3, :, :3, :]
            taps.append(t)                                         # (N,Ho2,3,Wo2,3,Cin)
    p = jnp.stack(taps, axis=5)                                    # (N,Ho2,3,Wo2,3,9,Cin)
    p = p.transpose(0, 1, 3, 2, 4, 5, 6)                           # (N,Ho2,Wo2,3,3,9,Cin)
    return p.reshape(N, 9 * Ho2 * Wo2, 9 * Cin)


def downsample_convnet(x_nchw, params, *, nb=None):
    """Forward pass matching DownsampleConvNet.forward. Input/output are NCHW."""
    (w1, b1), (w2, b2), (w3, b3) = params
    N, Cin, H, W = x_nchw.shape
    Ch = w1.shape[-1]
    Cout = w3.shape[-1]
    # TODO(synk): H or W not divisible by 4 needs a halo'd row-block gather for
    # the stride-4 path instead of the 4x4 block view used in _conv1_patches.
    assert H % 4 == 0 and W % 4 == 0, "fused stride-4 path assumes H, W % 4 == 0"
    Ho2, Wo2 = H // 4, W // 4            # == floor((H-3)/4)+1 when H % 4 == 0

    if nb is None:
        # Batch-block to fatten the GEMM M, but keep >= 2 grid steps so v7x's
        # second TensorCore has work (on single-TC v5e/v6e pass nb=N instead).
        nb = max((d for d in range(1, N + 1) if N % d == 0 and N // d >= 2),
                 default=N)
    assert N % nb == 0
    grid_n = N // nb
    rows2 = nb * Ho2 * Wo2               # conv2/conv3 GEMM rows per grid step

    x = jnp.transpose(x_nchw, (0, 2, 3, 1)).astype(jnp.float32)    # NCHW -> NHWC
    xp = jnp.pad(x, ((0, 0), (1, 1), (1, 1), (0, 0)))              # conv1 pad=1
    # conv1 im2col hoisted to XLA, only at the positions conv2 reads; bf16
    # halves the per-step DMA and matches the MXU input dtype.
    p1 = _conv1_patches(xp, H, W, Cin, Ho2, Wo2).astype(jnp.bfloat16)

    # im2col-flattened bf16 weights (MXU inputs), f32 biases (epilogue).
    w1r = w1.reshape(9 * Cin, Ch).astype(jnp.bfloat16)
    w2r = w2.reshape(9 * Ch, Ch).astype(jnp.bfloat16)
    w3r = w3.reshape(9 * Ch, Cout).astype(jnp.bfloat16)
    b1r = b1.reshape(1, Ch).astype(jnp.float32)
    b2r = b2.reshape(1, Ch).astype(jnp.float32)
    b3r = b3.reshape(1, Cout).astype(jnp.float32)

    kernel = functools.partial(_fused_kernel, NB=nb, Ho2=Ho2, Wo2=Wo2,
                               Cin=Cin, Ch=Ch, Cout=Cout)

    out = pl.pallas_call(
        kernel,
        out_shape=jax.ShapeDtypeStruct((grid_n, rows2, Cout), jnp.float32),
        grid=(grid_n,),
        in_specs=[
            pl.BlockSpec((nb, 9 * Ho2 * Wo2, 9 * Cin), lambda g: (g, 0, 0)),
            pl.BlockSpec((9 * Cin, Ch), lambda g: (0, 0)),
            pl.BlockSpec((1, Ch), lambda g: (0, 0)),
            pl.BlockSpec((9 * Ch, Ch), lambda g: (0, 0)),
            pl.BlockSpec((1, Ch), lambda g: (0, 0)),
            pl.BlockSpec((9 * Ch, Cout), lambda g: (0, 0)),
            pl.BlockSpec((1, Cout), lambda g: (0, 0)),
        ],
        out_specs=pl.BlockSpec((1, rows2, Cout), lambda g: (g, 0, 0)),
        compiler_params=pltpu.CompilerParams(
            dimension_semantics=("parallel",),
            vmem_limit_bytes=32 * 1024 * 1024),   # explicit budget (v7x: 64 MiB phys)
    )(p1, w1r, b1r, w2r, b2r, w3r, b3r)

    out = out.reshape(N, Ho2, Wo2, Cout)           # rows were (n, q, r) per step
    return jnp.transpose(out, (0, 3, 1, 2))        # NHWC -> NCHW


def init_params(key, input_channels, hidden_dim):
    """Deterministic synthetic parameters (HWIO weight layout)."""
    k1, k2, k3, k4, k5, k6 = jax.random.split(key, 6)
    w1 = 0.1 * jax.random.normal(k1, (3, 3, input_channels, hidden_dim), jnp.float32)
    b1 = 0.1 * jax.random.normal(k2, (hidden_dim,), jnp.float32)
    w2 = 0.1 * jax.random.normal(k3, (3, 3, hidden_dim, hidden_dim), jnp.float32)
    b2 = 0.1 * jax.random.normal(k4, (hidden_dim,), jnp.float32)
    w3 = 0.1 * jax.random.normal(k5, (3, 3, hidden_dim, input_channels), jnp.float32)
    b3 = 0.1 * jax.random.normal(k6, (input_channels,), jnp.float32)
    return (w1, b1), (w2, b2), (w3, b3)


def reference_forward(x_nchw, params):
    """Pure-JAX reference (lax.conv) at matching bf16-input / f32-accum precision."""
    (w1, b1), (w2, b2), (w3, b3) = params
    dn = ("NHWC", "HWIO", "NHWC")

    def conv(x, w, b, stride, pad):
        y = jax.lax.conv_general_dilated(
            x.astype(jnp.bfloat16), w.astype(jnp.bfloat16),
            (stride, stride), [(pad, pad), (pad, pad)],
            dimension_numbers=dn, preferred_element_type=jnp.float32)
        return y + b.reshape(1, 1, 1, -1).astype(jnp.float32)

    x = jnp.transpose(x_nchw, (0, 2, 3, 1)).astype(jnp.float32)
    x = jax.nn.relu(conv(x, w1, b1, 1, 1))
    x = jax.nn.relu(conv(x, w2, b2, 4, 0))
    x = jax.nn.leaky_relu(conv(x, w3, b3, 1, 1), negative_slope=0.01)
    return jnp.transpose(x, (0, 3, 1, 2))


if __name__ == "__main__":
    batch, input_channels, hidden_dim, spatial = 2, 4, 32, 16

    key = jax.random.PRNGKey(0)
    kx, kp = jax.random.split(key)
    x = jax.random.normal(kx, (batch, input_channels, spatial, spatial), jnp.float32)
    params = init_params(kp, input_channels, hidden_dim)

    fwd = jax.jit(downsample_convnet)
    out = jax.block_until_ready(fwd(x, params))

    ref = jax.block_until_ready(reference_forward(x, params))
    assert out.shape == (batch, input_channels, spatial // 4, spatial // 4), out.shape
    max_err = float(jnp.max(jnp.abs(out - ref)))
    assert jnp.allclose(out, ref, rtol=1e-2, atol=1e-2), max_err

    print("KERNEL_OK")
</pallas_src>

<mosaic_0001>
module attributes {stable_mosaic.version = 11 : i64} {
  func.func @_fused_kernel(%arg0: i32, %arg1: memref<1x144x36xbf16, #tpu.memory_space<vmem>>, %arg2: memref<36x32xbf16, #tpu.memory_space<vmem>>, %arg3: memref<1x32xf32, #tpu.memory_space<vmem>>, %arg4: memref<288x32xbf16, #tpu.memory_space<vmem>>, %arg5: memref<1x32xf32, #tpu.memory_space<vmem>>, %arg6: memref<288x4xbf16, #tpu.memory_space<vmem>>, %arg7: memref<1x4xf32, #tpu.memory_space<vmem>>, %arg8: memref<1x16x4xf32, #tpu.memory_space<vmem>>) attributes {dimension_semantics = [#tpu.dimension_semantics<parallel>], iteration_bounds = array<i64: 2>, scalar_prefetch = 0 : i64, scratch_operands = 0 : i64, tpu.core_type = #tpu.core_type<tc>, window_params = [{transform_indices = @transform_0, window_bounds = array<i64: 1, 144, 36>}, {pipeline_mode = #tpu.pipeline_mode<synchronous>, transform_indices = @transform_1, window_bounds = array<i64: 36, 32>}, {pipeline_mode = #tpu.pipeline_mode<synchronous>, transform_indices = @transform_2, window_bounds = array<i64: 1, 32>}, {pipeline_mode = #tpu.pipeline_mode<synchronous>, transform_indices = @transform_3, window_bounds = array<i64: 288, 32>}, {pipeline_mode = #tpu.pipeline_mode<synchronous>, transform_indices = @transform_4, window_bounds = array<i64: 1, 32>}, {pipeline_mode = #tpu.pipeline_mode<synchronous>, transform_indices = @transform_5, window_bounds = array<i64: 288, 4>}, {pipeline_mode = #tpu.pipeline_mode<synchronous>, transform_indices = @transform_6, window_bounds = array<i64: 1, 4>}, {transform_indices = @transform_7, window_bounds = array<i64: 1, 16, 4>}]} {
    %c0 = arith.constant 0 : index
    %c0_0 = arith.constant 0 : index
    %c0_1 = arith.constant 0 : index
    %0 = vector.load %arg1[%c0, %c0_0, %c0_1] : memref<1x144x36xbf16, #tpu.memory_space<vmem>>, vector<1x144x36xbf16>
    %1 = vector.shape_cast %0 : vector<1x144x36xbf16> to vector<144x36xbf16>
    %c0_2 = arith.constant 0 : index
    %c0_3 = arith.constant 0 : index
    %2 = vector.load %arg2[%c0_2, %c0_3] : memref<36x32xbf16, #tpu.memory_space<vmem>>, vector<36x32xbf16>
    %cst = arith.constant dense<0.000000e+00> : vector<144x32xf32>
    %3 = tpu.matmul %1, %2, %cst {dimension_numbers = #tpu.dot_dimension_numbers<[1], [0], [0], [1], [0, 0, 1, 1], [], []>} : vector<144x36xbf16>, vector<36x32xbf16>, vector<144x32xf32> -> vector<144x32xf32>
    %c0_4 = arith.constant 0 : index
    %c0_5 = arith.constant 0 : index
    %4 = vector.load %arg3[%c0_4, %c0_5] : memref<1x32xf32, #tpu.memory_space<vmem>>, vector<1x32xf32>
    %5 = vector.broadcast %4 : vector<1x32xf32> to vector<144x32xf32>
    %6 = arith.addf %3, %5 : vector<144x32xf32>
    %cst_6 = arith.constant 0.000000e+00 : f32
    %7 = vector.broadcast %cst_6 : f32 to vector<144x32xf32>
    %8 = arith.maximumf %6, %7 : vector<144x32xf32>
    %9 = vector.shape_cast %8 : vector<144x32xf32> to vector<48x3x32xf32>
    %10 = vector.extract_strided_slice %9 {offsets = [0, 0, 0], sizes = [48, 1, 32], strides = [1, 1, 1]} : vector<48x3x32xf32> to vector<48x1x32xf32>
    %11 = vector.shape_cast %10 : vector<48x1x32xf32> to vector<48x32xf32>
    %12 = vector.extract_strided_slice %9 {offsets = [0, 1, 0], sizes = [48, 1, 32], strides = [1, 1, 1]} : vector<48x3x32xf32> to vector<48x1x32xf32>
    %13 = vector.shape_cast %12 : vector<48x1x32xf32> to vector<48x32xf32>
    %14 = vector.extract_strided_slice %9 {offsets = [0, 2, 0], sizes = [48, 1, 32], strides = [1, 1, 1]} : vector<48x3x32xf32> to vector<48x1x32xf32>
    %15 = vector.shape_cast %14 : vector<48x1x32xf32> to vector<48x32xf32>
    %16 = tpu.concatenate %11, %13, %15 in 1 : vector<48x32xf32>, vector<48x32xf32>, vector<48x32xf32> -> vector<48x96xf32>
    %17 = vector.shape_cast %16 : vector<48x96xf32> to vector<16x3x96xf32>
    %18 = vector.extract_strided_slice %17 {offsets = [0, 0, 0], sizes = [16, 1, 96], strides = [1, 1, 1]} : vector<16x3x96xf32> to vector<16x1x96xf32>
    %19 = vector.shape_cast %18 : vector<16x1x96xf32> to vector<16x96xf32>
    %20 = vector.extract_strided_slice %17 {offsets = [0, 1, 0], sizes = [16, 1, 96], strides = [1, 1, 1]} : vector<16x3x96xf32> to vector<16x1x96xf32>
    %21 = vector.shape_cast %20 : vector<16x1x96xf32> to vector<16x96xf32>
    %22 = vector.extract_strided_slice %17 {offsets = [0, 2, 0], sizes = [16, 1, 96], strides = [1, 1, 1]} : vector<16x3x96xf32> to vector<16x1x96xf32>
    %23 = vector.shape_cast %22 : vector<16x1x96xf32> to vector<16x96xf32>
    %24 = tpu.concatenate %19, %21, %23 in 1 : vector<16x96xf32>, vector<16x96xf32>, vector<16x96xf32> -> vector<16x288xf32>
    %25 = arith.truncf %24 : vector<16x288xf32> to vector<16x288xbf16>
    %c0_7 = arith.constant 0 : index
    %c0_8 = arith.constant 0 : index
    %26 = vector.load %arg4[%c0_7, %c0_8] : memref<288x32xbf16, #tpu.memory_space<vmem>>, vector<288x32xbf16>
    %cst_9 = arith.constant dense<0.000000e+00> : vector<16x32xf32>
    %27 = tpu.matmul %25, %26, %cst_9 {dimension_numbers = #tpu.dot_dimension_numbers<[1], [0], [0], [1], [0, 0, 1, 1], [], []>} : vector<16x288xbf16>, vector<288x32xbf16>, vector<16x32xf32> -> vector<16x32xf32>
    %c0_10 = arith.constant 0 : index
    %c0_11 = arith.constant 0 : index
    %28 = vector.load %arg5[%c0_10, %c0_11] : memref<1x32xf32, #tpu.memory_space<vmem>>, vector<1x32xf32>
    %29 = vector.broadcast %28 : vector<1x32xf32> to vector<16x32xf32>
    %30 = arith.addf %27, %29 : vector<16x32xf32>
    %cst_12 = arith.constant 0.000000e+00 : f32
    %31 = vector.broadcast %cst_12 : f32 to vector<16x32xf32>
    %32 = arith.maximumf %30, %31 : vector<16x32xf32>
    %33 = vector.shape_cast %32 : vector<16x32xf32> to vector<1x4x4x32xf32>
    %cst_13 = arith.constant 0.000000e+00 : f32
    %34 = vector.broadcast %cst_13 : f32 to vector<1x4x1x32xf32>
    %cst_14 = arith.constant 0.000000e+00 : f32
    %35 = vector.broadcast %cst_14 : f32 to vector<1x1x6x32xf32>
    %36 = tpu.concatenate %34, %33, %34 in 2 : vector<1x4x1x32xf32>, vector<1x4x4x32xf32>, vector<1x4x1x32xf32> -> vector<1x4x6x32xf32>
    %37 = tpu.concatenate %35, %36, %35 in 1 : vector<1x1x6x32xf32>, vector<1x4x6x32xf32>, vector<1x1x6x32xf32> -> vector<1x6x6x32xf32>
    %38 = vector.extract_strided_slice %37 {offsets = [0, 0, 0, 0], sizes = [1, 6, 4, 32], strides = [1, 1, 1, 1]} : vector<1x6x6x32xf32> to vector<1x6x4x32xf32>
    %39 = vector.extract_strided_slice %37 {offsets = [0, 0, 1, 0], sizes = [1, 6, 4, 32], strides = [1, 1, 1, 1]} : vector<1x6x6x32xf32> to vector<1x6x4x32xf32>
    %40 = vector.extract_strided_slice %37 {offsets = [0, 0, 2, 0], sizes = [1, 6, 4, 32], strides = [1, 1, 1, 1]} : vector<1x6x6x32xf32> to vector<1x6x4x32xf32>
    %41 = tpu.concatenate %38, %39, %40 in 3 : vector<1x6x4x32xf32>, vector<1x6x4x32xf32>, vector<1x6x4x32xf32> -> vector<1x6x4x96xf32>
    %42 = vector.extract_strided_slice %41 {offsets = [0, 0, 0, 0], sizes = [1, 4, 4, 96], strides = [1, 1, 1, 1]} : vector<1x6x4x96xf32> to vector<1x4x4x96xf32>
    %43 = vector.extract_strided_slice %41 {offsets = [0, 1, 0, 0], sizes = [1, 4, 4, 96], strides = [1, 1, 1, 1]} : vector<1x6x4x96xf32> to vector<1x4x4x96xf32>
    %44 = vector.extract_strided_slice %41 {offsets = [0, 2, 0, 0], sizes = [1, 4, 4, 96], strides = [1, 1, 1, 1]} : vector<1x6x4x96xf32> to vector<1x4x4x96xf32>
    %45 = tpu.concatenate %42, %43, %44 in 3 : vector<1x4x4x96xf32>, vector<1x4x4x96xf32>, vector<1x4x4x96xf32> -> vector<1x4x4x288xf32>
    %46 = vector.shape_cast %45 : vector<1x4x4x288xf32> to vector<16x288xf32>
    %47 = arith.truncf %46 : vector<16x288xf32> to vector<16x288xbf16>
    %c0_15 = arith.constant 0 : index
    %c0_16 = arith.constant 0 : index
    %48 = vector.load %arg6[%c0_15, %c0_16] : memref<288x4xbf16, #tpu.memory_space<vmem>>, vector<288x4xbf16>
    %cst_17 = arith.constant dense<0.000000e+00> : vector<16x4xf32>
    %49 = tpu.matmul %47, %48, %cst_17 {dimension_numbers = #tpu.dot_dimension_numbers<[1], [0], [0], [1], [0, 0, 1, 1], [], []>} : vector<16x288xbf16>, vector<288x4xbf16>, vector<16x4xf32> -> vector<16x4xf32>
    %c0_18 = arith.constant 0 : index
    %c0_19 = arith.constant 0 : index
    %50 = vector.load %arg7[%c0_18, %c0_19] : memref<1x4xf32, #tpu.memory_space<vmem>>, vector<1x4xf32>
    %51 = vector.broadcast %50 : vector<1x4xf32> to vector<16x4xf32>
    %52 = arith.addf %49, %51 : vector<16x4xf32>
    %cst_20 = arith.constant 0.000000e+00 : f32
    %53 = vector.broadcast %cst_20 : f32 to vector<16x4xf32>
    %54 = arith.cmpf oge, %52, %53 : vector<16x4xf32>
    %cst_21 = arith.constant 0.00999999977 : f32
    %55 = vector.broadcast %cst_21 : f32 to vector<16x4xf32>
    %56 = arith.mulf %55, %52 : vector<16x4xf32>
    %57 = arith.select %54, %52, %56 : vector<16x4xi1>, vector<16x4xf32>
    %58 = vector.shape_cast %57 : vector<16x4xf32> to vector<1x16x4xf32>
    %c0_22 = arith.constant 0 : index
    %c0_23 = arith.constant 0 : index
    %c0_24 = arith.constant 0 : index
    %59 = vector.load %arg8[%c0_22, %c0_23, %c0_24] : memref<1x16x4xf32, #tpu.memory_space<vmem>>, vector<1x16x4xf32>
    tpu.vector_store %arg8[%c0_22, %c0_23, %c0_24], %58 {strides = array<i32>} : memref<1x16x4xf32, #tpu.memory_space<vmem>>, vector<1x16x4xf32>,
    return
  }
  func.func @transform_0(%arg0: i32) -> (i32, i32, i32) {
    %c0_i32 = arith.constant 0 : i32
    %c0_i32_0 = arith.constant 0 : i32
    %c0_i32_1 = arith.constant 0 : i32
    return %arg0, %c0_i32, %c0_i32_0 : i32, i32, i32
  }
  func.func @transform_1(%arg0: i32) -> (i32, i32) {
    %c0_i32 = arith.constant 0 : i32
    %c0_i32_0 = arith.constant 0 : i32
    %c0_i32_1 = arith.constant 0 : i32
    return %c0_i32, %c0_i32_0 : i32, i32
  }
  func.func @transform_2(%arg0: i32) -> (i32, i32) {
    %c0_i32 = arith.constant 0 : i32
    %c0_i32_0 = arith.constant 0 : i32
    %c0_i32_1 = arith.constant 0 : i32
    return %c0_i32, %c0_i32_0 : i32, i32
  }
  func.func @transform_3(%arg0: i32) -> (i32, i32) {
    %c0_i32 = arith.constant 0 : i32
    %c0_i32_0 = arith.constant 0 : i32
    %c0_i32_1 = arith.constant 0 : i32
    return %c0_i32, %c0_i32_0 : i32, i32
  }
  func.func @transform_4(%arg0: i32) -> (i32, i32) {
    %c0_i32 = arith.constant 0 : i32
    %c0_i32_0 = arith.constant 0 : i32
    %c0_i32_1 = arith.constant 0 : i32
    return %c0_i32, %c0_i32_0 : i32, i32
  }
  func.func @transform_5(%arg0: i32) -> (i32, i32) {
    %c0_i32 = arith.constant 0 : i32
    %c0_i32_0 = arith.constant 0 : i32
    %c0_i32_1 = arith.constant 0 : i32
    return %c0_i32, %c0_i32_0 : i32, i32
  }
  func.func @transform_6(%arg0: i32) -> (i32, i32) {
    %c0_i32 = arith.constant 0 : i32
    %c0_i32_0 = arith.constant 0 : i32
    %c0_i32_1 = arith.constant 0 : i32
    return %c0_i32, %c0_i32_0 : i32, i32
  }
  func.func @transform_7(%arg0: i32) -> (i32, i32, i32) {
    %c0_i32 = arith.constant 0 : i32
    %c0_i32_0 = arith.constant 0 : i32
    %c0_i32_1 = arith.constant 0 : i32
    return %arg0, %c0_i32, %c0_i32_0 : i32, i32, i32
  }
}

</mosaic_0001>

<llo_original>
// kernel: downsample_convnet.1
$region0: #{downsample_convnet.1}
  #allocation0 [shape = 'u32[]', space=smem, size = 0x4, offset = 0x4, fixed_abs, tag = 'smem constant byte address 0x4 - core index']
  #allocation1 [shape = 'u32[72,128]{1,0:T(1,128)}', space=vmem, size = 0x9000, scoped, tag = 'internal scratch']
  %s0 = inlined_call_operand.vmem [shape: bf16[2,144,36], index: 0, kind: input, shape index: {}]
  %s1 = inlined_call_operand.vmem [shape: bf16[36,32], index: 1, kind: input, shape index: {}]
  %s2 = inlined_call_operand.vmem [shape: f32[1,32], index: 2, kind: input, shape index: {}]
  %s3 = inlined_call_operand.vmem [shape: bf16[288,32], index: 3, kind: input, shape index: {}]
  %s4 = inlined_call_operand.vmem [shape: f32[1,32], index: 4, kind: input, shape index: {}]
  %s5 = inlined_call_operand.vmem [shape: bf16[288,4], index: 5, kind: input, shape index: {}]
  %s6 = inlined_call_operand.vmem [shape: f32[1,4], index: 6, kind: input, shape index: {}]
  %s7 = inlined_call_operand.vmem [shape: f32[2,16,4], index: 7, kind: output, shape index: {}]
  %s8 = sld [smem:[#allocation0]]
  $region61: #{downsample_convnet.1} parent=0
    _
  %s10 = ssub.s32 1, %s8
  %s11 = scalar_select 0, %s10, %s8
  loop: start=0, step=1, limit=4
  $region2: #{downsample_convnet.1} parent=0 // loop_pre_header
    _
  $region3: #{downsample_convnet.1} parent=0 // loop_header
    %s13 = sphi 0, %s17
    %p14 = scmp.ge.s32.totalorder %s13, 4
    %s23 = sphi 0, %s25
    %s26 = sphi 0, %s23
    %s27 = sphi 0, %s26
    %s43 = sphi 0, %s27
    %s47 = sphi 0, %s47
    %s49 = sphi 0, %s47
    %s50 = sphi 0, %s49
    %s64 = sphi 0, %s50
    %s68 = sphi 0, %s68
    %s70 = sphi 0, %s68
    %s71 = sphi 0, %s70
    %s85 = sphi 0, %s71
    %s89 = sphi 0, %s89
    %s91 = sphi 0, %s89
    %s92 = sphi 0, %s91
    %s106 = sphi 0, %s92
    %s110 = sphi 0, %s110
    %s112 = sphi 0, %s110
    %s113 = sphi 0, %s112
    %s127 = sphi 0, %s113
    %s131 = sphi 0, %s131
    %s133 = sphi 0, %s131
    %s134 = sphi 0, %s133
    %s148 = sphi 0, %s134
    %s152 = sphi 0, %s152
    %s154 = sphi 0, %s152
    %s155 = sphi 0, %s154
    %s169 = sphi 0, %s155
    %s175 = sphi 0, %s177
    %s178 = sphi 0, %s175
    %s179 = sphi 0, %s178
    %s195 = sphi 0, %s179
  $region4: #{downsample_convnet.1} parent=0 // loop_header_branch
    %16 = sbr.rel (%p14) target = $region8
  $region5: #{downsample_convnet.1} parent=0 // loop_body
    %s18 = ssub.s32 %s13, 1
    %s19 = ssub.s32 %s13, 2
    %s20 = sadd.s32 %s13, 1
    %s21 = ssub.s32 %s13, %s20
    %p22 = scmp.eq.s32.totalorder %s21, 0
    %s24 = sadd.s32 %s23, 1
    %s25 = scalar_select %p22, %s23, %s24
    %p28 = pneg %p22
    %p29 = scmp.eq.s32.totalorder %s13, 1
    %p30 = por %p28, %p29
    %p31 = scmp.ne.s32.totalorder %s23, %s26
    %p32 = scmp.eq.s32.totalorder %s13, 0
    %p33 = por %p31, %p32
    %p34 = scmp.ne.s32.totalorder %s23, %s26
    %p35 = scmp.eq.s32.totalorder %s18, 1
    %p36 = por %p34, %p35
    %p37 = scmp.ne.s32.totalorder %s26, %s27
    %p38 = scmp.eq.s32.totalorder %s18, 0
    %p39 = por %p37, %p38
    %p40 = scmp.ne.s32.totalorder %s26, %s27
    %p41 = scmp.eq.s32.totalorder %s19, 1
    %p42 = por %p40, %p41
    %p44 = scmp.ne.s32.totalorder %s27, %s43
    %p45 = scmp.eq.s32.totalorder %s19, 0
    %p46 = por %p44, %p45
    %s48 = sadd.s32 %s47, 1
    %p51 = scmp.eq.s32.totalorder %s13, 1
    %p52 = scmp.ne.s32.totalorder %s47, %s49
    %p53 = scmp.eq.s32.totalorder %s13, 0
    %p54 = por %p52, %p53
    %p55 = scmp.ne.s32.totalorder %s47, %s49
    %p56 = scmp.eq.s32.totalorder %s18, 1
    %p57 = por %p55, %p56
    %p58 = scmp.ne.s32.totalorder %s49, %s50
    %p59 = scmp.eq.s32.totalorder %s18, 0
    %p60 = por %p58, %p59
    %p61 = scmp.ne.s32.totalorder %s49, %s50
    %p62 = scmp.eq.s32.totalorder %s19, 1
    %p63 = por %p61, %p62
    %p65 = scmp.ne.s32.totalorder %s50, %s64
    %p66 = scmp.eq.s32.totalorder %s19, 0
    %p67 = por %p65, %p66
    %s69 = sadd.s32 %s68, 1
    %p72 = scmp.eq.s32.totalorder %s13, 1
    %p73 = scmp.ne.s32.totalorder %s68, %s70
    %p74 = scmp.eq.s32.totalorder %s13, 0
    %p75 = por %p73, %p74
    %p76 = scmp.ne.s32.totalorder %s68, %s70
    %p77 = scmp.eq.s32.totalorder %s18, 1
    %p78 = por %p76, %p77
    %p79 = scmp.ne.s32.totalorder %s70, %s71
    %p80 = scmp.eq.s32.totalorder %s18, 0
    %p81 = por %p79, %p80
    %p82 = scmp.ne.s32.totalorder %s70, %s71
    %p83 = scmp.eq.s32.totalorder %s19, 1
    %p84 = por %p82, %p83
    %p86 = scmp.ne.s32.totalorder %s71, %s85
    %p87 = scmp.eq.s32.totalorder %s19, 0
    %p88 = por %p86, %p87
    %s90 = sadd.s32 %s89, 1
    %p93 = scmp.eq.s32.totalorder %s13, 1
    %p94 = scmp.ne.s32.totalorder %s89, %s91
    %p95 = scmp.eq.s32.totalorder %s13, 0
    %p96 = por %p94, %p95
    %p97 = scmp.ne.s32.totalorder %s89, %s91
    %p98 = scmp.eq.s32.totalorder %s18, 1
    %p99 = por %p97, %p98
    %p100 = scmp.ne.s32.totalorder %s91, %s92
    %p101 = scmp.eq.s32.totalorder %s18, 0
    %p102 = por %p100, %p101
    %p103 = scmp.ne.s32.totalorder %s91, %s92
    %p104 = scmp.eq.s32.totalorder %s19, 1
    %p105 = por %p103, %p104
    %p107 = scmp.ne.s32.totalorder %s92, %s106
    %p108 = scmp.eq.s32.totalorder %s19, 0
    %p109 = por %p107, %p108
    %s111 = sadd.s32 %s110, 1
    %p114 = scmp.eq.s32.totalorder %s13, 1
    %p115 = scmp.ne.s32.totalorder %s110, %s112
    %p116 = scmp.eq.s32.totalorder %s13, 0
    %p117 = por %p115, %p116
    %p118 = scmp.ne.s32.totalorder %s110, %s112
    %p119 = scmp.eq.s32.totalorder %s18, 1
    %p120 = por %p118, %p119
    %p121 = scmp.ne.s32.totalorder %s112, %s113
    %p122 = scmp.eq.s32.totalorder %s18, 0
    %p123 = por %p121, %p122
    %p124 = scmp.ne.s32.totalorder %s112, %s113
    %p125 = scmp.eq.s32.totalorder %s19, 1
    %p126 = por %p124, %p125
    %p128 = scmp.ne.s32.totalorder %s113, %s127
    %p129 = scmp.eq.s32.totalorder %s19, 0
    %p130 = por %p128, %p129
    %s132 = sadd.s32 %s131, 1
    %p135 = scmp.eq.s32.totalorder %s13, 1
    %p136 = scmp.ne.s32.totalorder %s131, %s133
    %p137 = scmp.eq.s32.totalorder %s13, 0
    %p138 = por %p136, %p137
    %p139 = scmp.ne.s32.totalorder %s131, %s133
    %p140 = scmp.eq.s32.totalorder %s18, 1
    %p141 = por %p139, %p140
    %p142 = scmp.ne.s32.totalorder %s133, %s134
    %p143 = scmp.eq.s32.totalorder %s18, 0
    %p144 = por %p142, %p143
    %p145 = scmp.ne.s32.totalorder %s133, %s134
    %p146 = scmp.eq.s32.totalorder %s19, 1
    %p147 = por %p145, %p146
    %p149 = scmp.ne.s32.totalorder %s134, %s148
    %p150 = scmp.eq.s32.totalorder %s19, 0
    %p151 = por %p149, %p150
    %s153 = sadd.s32 %s152, 1
    %p156 = scmp.eq.s32.totalorder %s13, 1
    %p157 = scmp.ne.s32.totalorder %s152, %s154
    %p158 = scmp.eq.s32.totalorder %s13, 0
    %p159 = por %p157, %p158
    %p160 = scmp.ne.s32.totalorder %s152, %s154
    %p161 = scmp.eq.s32.totalorder %s18, 1
    %p162 = por %p160, %p161
    %p163 = scmp.ne.s32.totalorder %s154, %s155
    %p164 = scmp.eq.s32.totalorder %s18, 0
    %p165 = por %p163, %p164
    %p166 = scmp.ne.s32.totalorder %s154, %s155
    %p167 = scmp.eq.s32.totalorder %s19, 1
    %p168 = por %p166, %p167
    %p170 = scmp.ne.s32.totalorder %s155, %s169
    %p171 = scmp.eq.s32.totalorder %s19, 0
    %p172 = por %p170, %p171
    %s173 = ssub.s32 %s13, %s20
    %p174 = scmp.eq.s32.totalorder %s173, 0
    %s176 = sadd.s32 %s175, 1
    %s177 = scalar_select %p174, %s175, %s176
    %p180 = pneg %p174
    %p181 = scmp.eq.s32.totalorder %s13, 1
    %p182 = por %p180, %p181
    %p183 = scmp.ne.s32.totalorder %s175, %s178
    %p184 = scmp.eq.s32.totalorder %s13, 0
    %p185 = por %p183, %p184
    %p186 = scmp.ne.s32.totalorder %s175, %s178
    %p187 = scmp.eq.s32.totalorder %s18, 1
    %p188 = por %p186, %p187
    %p189 = scmp.ne.s32.totalorder %s178, %s179
    %p190 = scmp.eq.s32.totalorder %s18, 0
    %p191 = por %p189, %p190
    %p192 = scmp.ne.s32.totalorder %s178, %s179
    %p193 = scmp.eq.s32.totalorder %s19, 1
    %p194 = por %p192, %p193
    %p196 = scmp.ne.s32.totalorder %s179, %s195
    %p197 = scmp.eq.s32.totalorder %s19, 0
    %p198 = por %p196, %p197
    %p199 = scmp.le.s32.totalorder 1, %s13
    %p200 = scmp.lt.s32.totalorder %s13, 3
    %p201 = pnand %p199, %p200
    %p202 = pneg %p201
    // Predicated region
    $region9: #{downsample_convnet.1} parent=5 // pred_check
      _
    $region10: #{downsample_convnet.1} parent=5 // pred_check_branch
      %204 = sbr.rel (%p201) target = $region12
    $region11: #{downsample_convnet.1} parent=5 // pred_region
      %s205 = ssub.s32 %s13, 1
      // Predicated region
      $region13: #{downsample_convnet.1} parent=11 // pred_check
        %p206 = pneg %p60
      $region14: #{downsample_convnet.1} parent=11 // pred_check_branch
        %208 = sbr.rel (%p206) target = $region16
      $region15: #{downsample_convnet.1} parent=11 // pred_region
        _
      $region16: #{downsample_convnet.1} parent=11 // pred_fallthru
        _
      // Predicated region
      $region17: #{downsample_convnet.1} parent=11 // pred_check
        %p209 = pneg %p81
      $region18: #{downsample_convnet.1} parent=11 // pred_check_branch
        %211 = sbr.rel (%p209) target = $region20
      $region19: #{downsample_convnet.1} parent=11 // pred_region
        _
      $region20: #{downsample_convnet.1} parent=11 // pred_fallthru
        _
      // Predicated region
      $region21: #{downsample_convnet.1} parent=11 // pred_check
        %p212 = pneg %p102
      $region22: #{downsample_convnet.1} parent=11 // pred_check_branch
        %214 = sbr.rel (%p212) target = $region24
      $region23: #{downsample_convnet.1} parent=11 // pred_region
        _
      $region24: #{downsample_convnet.1} parent=11 // pred_fallthru
        _
      // Predicated region
      $region25: #{downsample_convnet.1} parent=11 // pred_check
        %p215 = pneg %p123
      $region26: #{downsample_convnet.1} parent=11 // pred_check_branch
        %217 = sbr.rel (%p215) target = $region28
      $region27: #{downsample_convnet.1} parent=11 // pred_region
        _
      $region28: #{downsample_convnet.1} parent=11 // pred_fallthru
        _
      // Predicated region
      $region29: #{downsample_convnet.1} parent=11 // pred_check
        %p218 = pneg %p144
      $region30: #{downsample_convnet.1} parent=11 // pred_check_branch
        %220 = sbr.rel (%p218) target = $region32
      $region31: #{downsample_convnet.1} parent=11 // pred_region
        _
      $region32: #{downsample_convnet.1} parent=11 // pred_fallthru
        _
      // Predicated region
      $region33: #{downsample_convnet.1} parent=11 // pred_check
        %p221 = pneg %p165
      $region34: #{downsample_convnet.1} parent=11 // pred_check_branch
        %223 = sbr.rel (%p221) target = $region36
      $region35: #{downsample_convnet.1} parent=11 // pred_region
        _
      $region36: #{downsample_convnet.1} parent=11 // pred_fallthru
        _
    $region12: #{downsample_convnet.1} parent=5 // pred_fallthru
      _
    %p224 = scmp.lt.s32.totalorder %s13, 2
    // Predicated region
    $region37: #{downsample_convnet.1} parent=5 // pred_check
      %p225 = pneg %p224
    $region38: #{downsample_convnet.1} parent=5 // pred_check_branch
      %227 = sbr.rel (%p225) target = $region40
    $region39: #{downsample_convnet.1} parent=5 // pred_region
      // Predicated region
      $region41: #{downsample_convnet.1} parent=39 // pred_check
        %p228 = pneg %p33
      $region42: #{downsample_convnet.1} parent=39 // pred_check_branch
        %230 = sbr.rel (%p228) target = $region44
      $region43: #{downsample_convnet.1} parent=39 // pred_region
        %p231 = scmp.lt.s32.totalorder %s13, 1
        %s232 = scalar_select %p231, %s13, 1
        %s233 = smul.addr %s232, 18
        %s234 = smul.addr %s233, 4
        %s235 = scalar_lea.vmem %s0, %s234
      $region44: #{downsample_convnet.1} parent=39 // pred_fallthru
        _
    $region40: #{downsample_convnet.1} parent=5 // pred_fallthru
      _
    %p236 = scmp.le.s32.totalorder 1, %s13
    %p237 = scmp.lt.s32.totalorder %s13, 3
    %p238 = pnand %p236, %p237
    %p239 = pneg %p238
    // Predicated region
    $region45: #{downsample_convnet.1} parent=5 // pred_check
      _
    $region46: #{downsample_convnet.1} parent=5 // pred_check_branch
      %241 = sbr.rel (%p238) target = $region48
    $region47: #{downsample_convnet.1} parent=5 // pred_region
      %s242 = ssub.s32 %s13, 1
      %p243 = scmp.lt.s32.totalorder %s18, 1
      %s244 = scalar_select %p243, %s18, 1
      %s245 = smul.addr %s244, 18
      %s246 = smul.addr %s245, 4
      %s247 = scalar_lea.vmem %s0, %s246
      %p248 = pneg %p39
      %p249 = pneg %p36
      %p250 = pneg %p60
      %p251 = pneg %p57
      %p252 = pneg %p81
      %p253 = pneg %p78
      %p254 = pneg %p102
      %p255 = pneg %p99
      %p256 = pneg %p123
      %p257 = pneg %p120
      %p258 = pneg %p144
      %p259 = pneg %p141
      %p260 = pneg %p165
      %p261 = pneg %p162
      %p262 = pneg %p191
      %p263 = pneg %p188
      %p264 = scmp.lt.s32.totalorder %s18, 1
      %s265 = scalar_select %p264, %s18, 1
      %s266 = smul.addr %s265, 2
      %s267 = smul.addr %s266, 8
      %s268 = scalar_lea.vmem %s7, %s267
      %p269 = scmp.lt.s32.totalorder %s18, 1
      %s270 = scalar_select %p269, %s18, 1
      %s271 = smul.addr %s270, 18
      %s272 = smul.addr %s271, 4
      %s273 = scalar_lea.vmem %s0, %s272
      %p274 = scmp.lt.s32.totalorder %s18, 1
      %s275 = scalar_select %p274, %s18, 1
      %s276 = smul.addr %s275, 2
      %s277 = smul.addr %s276, 8
      %s278 = scalar_lea.vmem %s7, %s277
      %v280 = vld [vmem:[%s273] sm:$0xf]
      %v281 = vld [vmem:[%s273 + $0x4] sm:$0xf]
      %v282 = vld [vmem:[%s273 + $0x8] sm:$0xf]
      %v283 = vld [vmem:[%s273 + $0xc] sm:$0xf]
      %v284 = vld [vmem:[%s273 + $0x10] sm:$0xf]
      %v285 = vld [vmem:[%s273 + $0x14] sm:$0xf]
      %v286 = vld [vmem:[%s273 + $0x18] sm:$0xf]
      %v287 = vld [vmem:[%s273 + $0x1c] sm:$0xf]
      %v288 = vld [vmem:[%s273 + $0x20] sm:$0xf]
      %v289 = vld [vmem:[%s273 + $0x24] sm:$0xf]
      %v290 = vld [vmem:[%s273 + $0x28] sm:$0xf]
      %v291 = vld [vmem:[%s273 + $0x2c] sm:$0xf]
      %v292 = vld [vmem:[%s273 + $0x30] sm:$0xf]
      %v293 = vld [vmem:[%s273 + $0x34] sm:$0xf]
      %v294 = vld [vmem:[%s273 + $0x38] sm:$0xf]
      %v295 = vld [vmem:[%s273 + $0x3c] sm:$0xf]
      %v296 = vld [vmem:[%s273 + $0x40] sm:$0xf]
      %v297 = vld [vmem:[%s273 + $0x44] sm:$0xf]
      %v298 = vld [vmem:[%s1] sm:$0xf]
      %v299 = vld [vmem:[%s1 + $0x4] sm:$0xf]
      %v300 = vld [vmem:[%s1 + $0x8] sm:$0xf]
      %v301 = vld [vmem:[%s1 + $0xc] sm:$0xf]
      %v302 = vld [vmem:[%s1 + $0x10] sm:$0x3]
      %v303 = vld [vmem:[%s2] sm:$0x1]
      %v305 = vperm.slane %v303, 0
      %v325 = vunpack.c.l.b16 %v280
      %v326 = vunpack.c.l.b16 %v281
      %v327 = vunpack.c.l.b16 %v282
      %v328 = vunpack.c.l.b16 %v283
      %v329 = vunpack.c.l.b16 %v284
      %v330 = vunpack.c.l.b16 %v285
      %v331 = vunpack.c.l.b16 %v286
      %v332 = vunpack.c.l.b16 %v287
      %v333 = vunpack.c.l.b16 %v288
      %v334 = vunpack.c.l.b16 %v289
      %v335 = vunpack.c.l.b16 %v290
      %v336 = vunpack.c.l.b16 %v291
      %v337 = vunpack.c.l.b16 %v292
      %v338 = vunpack.c.l.b16 %v293
      %v339 = vunpack.c.l.b16 %v294
      %v340 = vunpack.c.l.b16 %v295
      %v341 = vunpack.c.l.b16 %v296
      %v342 = vunpack.c.l.b16 %v297
      %v343 = vpack.c.b16 %v326, %v325
      %v344 = vpack.c.b16 %v328, %v327
      %v345 = vpack.c.b16 %v330, %v329
      %v346 = vpack.c.b16 %v332, %v331
      %v347 = vpack.c.b16 %v334, %v333
      %v348 = vpack.c.b16 %v336, %v335
      %v349 = vpack.c.b16 %v338, %v337
      %v350 = vpack.c.b16 %v340, %v339
      %v351 = vpack.c.b16 %v342, %v341
      %v357 = vunpack.c.l.b16 %v298
      %v358 = vunpack.c.l.b16 %v299
      %v359 = vunpack.c.l.b16 %v300
      %v360 = vunpack.c.l.b16 %v301
      %v361 = vunpack.c.l.b16 %v302
      %v362 = vpack.c.b16 %v358, %v357
      %v363 = vpack.c.b16 %v360, %v359
      %v364 = vpack.c.b16 %v361, %v361
      %vm367 = vcmask 293888
      %v369 = vsel %vm367, %v343, 0
      %v372 = vsel %vm367, %v344, 0
      %v375 = vsel %vm367, %v345, 0
      %v378 = vsel %vm367, %v346, 0
      %v381 = vsel %vm367, %v347, 0
      %v384 = vsel %vm367, %v348, 0
      %v387 = vsel %vm367, %v349, 0
      %v390 = vsel %vm367, %v350, 0
      %v393 = vsel %vm367, %v351, 0
      %vm395 = vcmask 1041408
      %v397 = vsel %vm395, %v364, 0
      %399 = vmatpush.bf16.msra.mxu0 0
      %400 = vmatpush.bf16.msra.mxu0 0
      %401 = vmatpush.bf16.msra.mxu0 0
      %402 = vmatpush.bf16.msra.mxu0 0
      %403 = vmatpush.bf16.msra.mxu0 0
      %404 = vmatpush.bf16.msra.mxu0 %v397
      %405 = vmatpush.bf16.msra.mxu0 %v363
      %406 = vmatpush.bf16.msra.mxu0 %v362
      %407 = vmatmul.bf16.gmra.mxu0 %v369
      %v408 = vpop.f32.mrf.mxu0
      %v409 = vadd.f32 %v305, %v408
      %v410 = vpop.f32.mrf.mxu0
      %v411 = vadd.f32 %v305, %v410
      %412 = vmatmul.bf16.gmra.mxu0 %v372
      %v413 = vpop.f32.mrf.mxu0
      %v414 = vadd.f32 %v305, %v413
      %v415 = vpop.f32.mrf.mxu0
      %v416 = vadd.f32 %v305, %v415
      %417 = vmatmul.bf16.gmra.mxu0 %v375
      %v418 = vpop.f32.mrf.mxu0
      %v419 = vadd.f32 %v305, %v418
      %v420 = vpop.f32.mrf.mxu0
      %v421 = vadd.f32 %v305, %v420
      %422 = vmatmul.bf16.gmra.mxu0 %v378
      %v423 = vpop.f32.mrf.mxu0
      %v424 = vadd.f32 %v305, %v423
      %v425 = vpop.f32.mrf.mxu0
      %v426 = vadd.f32 %v305, %v425
      %427 = vmatmul.bf16.gmra.mxu0 %v381
      %v428 = vpop.f32.mrf.mxu0
      %v429 = vadd.f32 %v305, %v428
      %v430 = vpop.f32.mrf.mxu0
      %v431 = vadd.f32 %v305, %v430
      %432 = vmatmul.bf16.gmra.mxu0 %v384
      %v433 = vpop.f32.mrf.mxu0
      %v434 = vadd.f32 %v305, %v433
      %v435 = vpop.f32.mrf.mxu0
      %v436 = vadd.f32 %v305, %v435
      %437 = vmatmul.bf16.gmra.mxu0 %v387
      %v438 = vpop.f32.mrf.mxu0
      %v439 = vadd.f32 %v305, %v438
      %v440 = vpop.f32.mrf.mxu0
      %v441 = vadd.f32 %v305, %v440
      %442 = vmatmul.bf16.gmra.mxu0 %v390
      %v443 = vpop.f32.mrf.mxu0
      %v444 = vadd.f32 %v305, %v443
      %v445 = vpop.f32.mrf.mxu0
      %v446 = vadd.f32 %v305, %v445
      %447 = vmatmul.bf16.gmra.mxu0 %v393
      %v448 = vpop.f32.mrf.mxu0
      %v449 = vadd.f32 %v305, %v448
      %v450 = vpop.f32.mrf.mxu0
      %v451 = vadd.f32 %v305, %v450
      %452 = vdwg.mxu0
      %v453 = vmax.f32 %v409, 0.0
      %v454 = vmax.f32 %v411, 0.0
      %v455 = vmax.f32 %v414, 0.0
      %v456 = vmax.f32 %v416, 0.0
      %v457 = vmax.f32 %v419, 0.0
      %v458 = vmax.f32 %v421, 0.0
      %v459 = vmax.f32 %v424, 0.0
      %v460 = vmax.f32 %v426, 0.0
      %v461 = vmax.f32 %v429, 0.0
      %v462 = vmax.f32 %v431, 0.0
      %v463 = vmax.f32 %v434, 0.0
      %v464 = vmax.f32 %v436, 0.0
      %v465 = vmax.f32 %v439, 0.0
      %v466 = vmax.f32 %v441, 0.0
      %v467 = vmax.f32 %v444, 0.0
      %v468 = vmax.f32 %v446, 0.0
      %v469 = vmax.f32 %v449, 0.0
      %v470 = vmax.f32 %v451, 0.0
      %v489 = vrot.slane %v453, 1
      %v490 = vrot.slane %v453, 2
      %v491 = vrot.slane %v453, 3
      %v492 = vrot.slane %v453, 4
      %v493 = vrot.slane %v453, 5
      %v494 = vrot.slane %v453, 6
      %v495 = vrot.slane %v453, 7
      %v496 = vrot.slane %v454, 1
      %v497 = vrot.slane %v454, 2
      %v498 = vrot.slane %v454, 3
      %v499 = vrot.slane %v454, 4
      %v500 = vrot.slane %v454, 5
      %v501 = vrot.slane %v454, 6
      %v502 = vrot.slane %v454, 7
      %v503 = vrot.slane %v455, 1
      %v504 = vrot.slane %v455, 2
      %v505 = vrot.slane %v455, 3
      %v506 = vrot.slane %v455, 4
      %v507 = vrot.slane %v455, 5
      %v508 = vrot.slane %v455, 6
      %v509 = vrot.slane %v455, 7
      %v510 = vrot.slane %v456, 1
      %v511 = vrot.slane %v456, 2
      %v512 = vrot.slane %v456, 3
      %v513 = vrot.slane %v456, 4
      %v514 = vrot.slane %v456, 5
      %v515 = vrot.slane %v456, 6
      %v516 = vrot.slane %v456, 7
      %v517 = vrot.slane %v457, 1
      %v518 = vrot.slane %v457, 2
      %v519 = vrot.slane %v457, 3
      %v520 = vrot.slane %v457, 4
      %v521 = vrot.slane %v457, 5
      %v522 = vrot.slane %v457, 6
      %v523 = vrot.slane %v457, 7
      %v524 = vrot.slane %v458, 1
      %v525 = vrot.slane %v458, 2
      %v526 = vrot.slane %v458, 3
      %v527 = vrot.slane %v458, 4
      %v528 = vrot.slane %v458, 5
      %v529 = vrot.slane %v458, 6
      %v530 = vrot.slane %v458, 7
      %v531 = vrot.slane %v459, 1
      %v532 = vrot.slane %v459, 2
      %v533 = vrot.slane %v459, 3
      %v534 = vrot.slane %v459, 4
      %v535 = vrot.slane %v459, 5
      %v536 = vrot.slane %v459, 6
      %v537 = vrot.slane %v459, 7
      %v538 = vrot.slane %v460, 1
      %v539 = vrot.slane %v460, 2
      %v540 = vrot.slane %v460, 3
      %v541 = vrot.slane %v460, 4
      %v542 = vrot.slane %v460, 5
      %v543 = vrot.slane %v460, 6
      %v544 = vrot.slane %v460, 7
      %v545 = vrot.slane %v461, 1
      %v546 = vrot.slane %v461, 2
      %v547 = vrot.slane %v461, 3
      %v548 = vrot.slane %v461, 4
      %v549 = vrot.slane %v461, 5
      %v550 = vrot.slane %v461, 6
      %v551 = vrot.slane %v461, 7
      %v552 = vrot.slane %v462, 1
      %v553 = vrot.slane %v462, 2
      %v554 = vrot.slane %v462, 3
      %v555 = vrot.slane %v462, 4
      %v556 = vrot.slane %v462, 5
      %v557 = vrot.slane %v462, 6
      %v558 = vrot.slane %v462, 7
      %v559 = vrot.slane %v463, 1
      %v560 = vrot.slane %v463, 2
      %v561 = vrot.slane %v463, 3
      %v562 = vrot.slane %v463, 4
      %v563 = vrot.slane %v463, 5
      %v564 = vrot.slane %v463, 6
      %v565 = vrot.slane %v463, 7
      %v566 = vrot.slane %v464, 1
      %v567 = vrot.slane %v464, 2
      %v568 = vrot.slane %v464, 3
      %v569 = vrot.slane %v464, 4
      %v570 = vrot.slane %v464, 5
      %v571 = vrot.slane %v464, 6
      %v572 = vrot.slane %v464, 7
      %v573 = vrot.slane %v465, 1
      %v574 = vrot.slane %v465, 2
      %v575 = vrot.slane %v465, 3
      %v576 = vrot.slane %v465, 4
      %v577 = vrot.slane %v465, 5
      %v578 = vrot.slane %v465, 6
      %v579 = vrot.slane %v465, 7
      %v580 = vrot.slane %v466, 1
      %v581 = vrot.slane %v466, 2
      %v582 = vrot.slane %v466, 3
      %v583 = vrot.slane %v466, 4
      %v584 = vrot.slane %v466, 5
      %v585 = vrot.slane %v466, 6
      %v586 = vrot.slane %v466, 7
      %v587 = vrot.slane %v467, 1
      %v588 = vrot.slane %v467, 2
      %v589 = vrot.slane %v467, 3
      %v590 = vrot.slane %v467, 4
      %v591 = vrot.slane %v467, 5
      %v592 = vrot.slane %v467, 6
      %v593 = vrot.slane %v467, 7
      %v594 = vrot.slane %v468, 1
      %v595 = vrot.slane %v468, 2
      %v596 = vrot.slane %v468, 3
      %v597 = vrot.slane %v468, 4
      %v598 = vrot.slane %v468, 5
      %v599 = vrot.slane %v468, 6
      %v600 = vrot.slane %v468, 7
      %v601 = vrot.slane %v469, 1
      %v602 = vrot.slane %v469, 2
      %v603 = vrot.slane %v469, 3
      %v604 = vrot.slane %v469, 4
      %v605 = vrot.slane %v469, 5
      %v606 = vrot.slane %v469, 6
      %v607 = vrot.slane %v469, 7
      %v608 = vrot.slane %v470, 1
      %v609 = vrot.slane %v470, 2
      %v610 = vrot.slane %v470, 3
      %v611 = vrot.slane %v470, 4
      %v612 = vrot.slane %v470, 5
      %v613 = vrot.slane %v470, 6
      %v614 = vrot.slane %v470, 7
      %615 = vst [vmem:[#allocation1] ss:$9 sm:$0xff] %v453
      %s616 = scalar_lea.vmem [#allocation1], 1
      %617 = vst [vmem:[%s616] ss:$9 sm:$0xff] %v491
      %s618 = scalar_lea.vmem [#allocation1], 2
      %619 = vst [vmem:[%s618] ss:$9 sm:$0xff] %v494
      %s620 = scalar_lea.vmem [#allocation1], 3
      %621 = vst [vmem:[%s620] ss:$9 sm:$0xff] %v496
      %s622 = scalar_lea.vmem [#allocation1], 4
      %623 = vst [vmem:[%s622] ss:$9 sm:$0xff] %v499
      %s624 = scalar_lea.vmem [#allocation1], 5
      %625 = vst [vmem:[%s624] ss:$9 sm:$0xff] %v502
      %s626 = scalar_lea.vmem [#allocation1], 6
      %627 = vst [vmem:[%s626] ss:$9 sm:$0xff] %v504
      %s628 = scalar_lea.vmem [#allocation1], 7
      %629 = vst [vmem:[%s628] ss:$9 sm:$0xff] %v507
      %v630 = vld [vmem:[#allocation1] sm:$0xff]
      %631 = vst [vmem:[#allocation1] ss:$9 sm:$0xff] %v456
      %632 = vst [vmem:[%s616] ss:$9 sm:$0xff] %v512
      %633 = vst [vmem:[%s618] ss:$9 sm:$0xff] %v515
      %634 = vst [vmem:[%s620] ss:$9 sm:$0xff] %v517
      %635 = vst [vmem:[%s622] ss:$9 sm:$0xff] %v520
      %636 = vst [vmem:[%s624] ss:$9 sm:$0xff] %v523
      %637 = vst [vmem:[%s626] ss:$9 sm:$0xff] %v525
      %638 = vst [vmem:[%s628] ss:$9 sm:$0xff] %v528
      %v639 = vld [vmem:[#allocation1] sm:$0xff]
      %640 = vst [vmem:[#allocation1] ss:$9 sm:$0xff] %v459
      %641 = vst [vmem:[%s616] ss:$9 sm:$0xff] %v533
      %642 = vst [vmem:[%s618] ss:$9 sm:$0xff] %v536
      %643 = vst [vmem:[%s620] ss:$9 sm:$0xff] %v538
      %644 = vst [vmem:[%s622] ss:$9 sm:$0xff] %v541
      %645 = vst [vmem:[%s624] ss:$9 sm:$0xff] %v544
      %646 = vst [vmem:[%s626] ss:$9 sm:$0xff] %v546
      %647 = vst [vmem:[%s628] ss:$9 sm:$0xff] %v549
      %v648 = vld [vmem:[#allocation1] sm:$0xff]
      %649 = vst [vmem:[#allocation1] ss:$9 sm:$0xff] %v462
      %650 = vst [vmem:[%s616] ss:$9 sm:$0xff] %v554
      %651 = vst [vmem:[%s618] ss:$9 sm:$0xff] %v557
      %652 = vst [vmem:[%s620] ss:$9 sm:$0xff] %v559
      %653 = vst [vmem:[%s622] ss:$9 sm:$0xff] %v562
      %654 = vst [vmem:[%s624] ss:$9 sm:$0xff] %v565
      %655 = vst [vmem:[%s626] ss:$9 sm:$0xff] %v567
      %656 = vst [vmem:[%s628] ss:$9 sm:$0xff] %v570
      %v657 = vld [vmem:[#allocation1] sm:$0xff]
      %658 = vst [vmem:[#allocation1] ss:$9 sm:$0xff] %v465
      %659 = vst [vmem:[%s616] ss:$9 sm:$0xff] %v575
      %660 = vst [vmem:[%s618] ss:$9 sm:$0xff] %v578
      %661 = vst [vmem:[%s620] ss:$9 sm:$0xff] %v580
      %662 = vst [vmem:[%s622] ss:$9 sm:$0xff] %v583
      %663 = vst [vmem:[%s624] ss:$9 sm:$0xff] %v586
      %664 = vst [vmem:[%s626] ss:$9 sm:$0xff] %v588
      %665 = vst [vmem:[%s628] ss:$9 sm:$0xff] %v591
      %v666 = vld [vmem:[#allocation1] sm:$0xff]
      %667 = vst [vmem:[#allocation1] ss:$9 sm:$0xff] %v468
      %668 = vst [vmem:[%s616] ss:$9 sm:$0xff] %v596
      %669 = vst [vmem:[%s618] ss:$9 sm:$0xff] %v599
      %670 = vst [vmem:[%s620] ss:$9 sm:$0xff] %v601
      %671 = vst [vmem:[%s622] ss:$9 sm:$0xff] %v604
      %672 = vst [vmem:[%s624] ss:$9 sm:$0xff] %v607
      %673 = vst [vmem:[%s626] ss:$9 sm:$0xff] %v609
      %674 = vst [vmem:[%s628] ss:$9 sm:$0xff] %v612
      %v675 = vld [vmem:[#allocation1] sm:$0xff]
      %682 = vst [vmem:[#allocation1] ss:$9 sm:$0xff] %v489
      %s683 = scalar_lea.vmem [#allocation1], 1
      %684 = vst [vmem:[%s683] ss:$9 sm:$0xff] %v492
      %s685 = scalar_lea.vmem [#allocation1], 2
      %686 = vst [vmem:[%s685] ss:$9 sm:$0xff] %v495
      %s687 = scalar_lea.vmem [#allocation1], 3
      %688 = vst [vmem:[%s687] ss:$9 sm:$0xff] %v497
      %s689 = scalar_lea.vmem [#allocation1], 4
      %690 = vst [vmem:[%s689] ss:$9 sm:$0xff] %v500
      %s691 = scalar_lea.vmem [#allocation1], 5
      %692 = vst [vmem:[%s691] ss:$9 sm:$0xff] %v455
      %s693 = scalar_lea.vmem [#allocation1], 6
      %694 = vst [vmem:[%s693] ss:$9 sm:$0xff] %v505
      %s695 = scalar_lea.vmem [#allocation1], 7
      %696 = vst [vmem:[%s695] ss:$9 sm:$0xff] %v508
      %v697 = vld [vmem:[#allocation1] sm:$0xff]
      %698 = vst [vmem:[#allocation1] ss:$9 sm:$0xff] %v510
      %699 = vst [vmem:[%s683] ss:$9 sm:$0xff] %v513
      %700 = vst [vmem:[%s685] ss:$9 sm:$0xff] %v516
      %701 = vst [vmem:[%s687] ss:$9 sm:$0xff] %v518
      %702 = vst [vmem:[%s689] ss:$9 sm:$0xff] %v521
      %703 = vst [vmem:[%s691] ss:$9 sm:$0xff] %v458
      %704 = vst [vmem:[%s693] ss:$9 sm:$0xff] %v526
      %705 = vst [vmem:[%s695] ss:$9 sm:$0xff] %v529
      %v706 = vld [vmem:[#allocation1] sm:$0xff]
      %707 = vst [vmem:[#allocation1] ss:$9 sm:$0xff] %v531
      %708 = vst [vmem:[%s683] ss:$9 sm:$0xff] %v534
      %709 = vst [vmem:[%s685] ss:$9 sm:$0xff] %v537
      %710 = vst [vmem:[%s687] ss:$9 sm:$0xff] %v539
      %711 = vst [vmem:[%s689] ss:$9 sm:$0xff] %v542
      %712 = vst [vmem:[%s691] ss:$9 sm:$0xff] %v461
      %713 = vst [vmem:[%s693] ss:$9 sm:$0xff] %v547
      %714 = vst [vmem:[%s695] ss:$9 sm:$0xff] %v550
      %v715 = vld [vmem:[#allocation1] sm:$0xff]
      %716 = vst [vmem:[#allocation1] ss:$9 sm:$0xff] %v552
      %717 = vst [vmem:[%s683] ss:$9 sm:$0xff] %v555
      %718 = vst [vmem:[%s685] ss:$9 sm:$0xff] %v558
      %719 = vst [vmem:[%s687] ss:$9 sm:$0xff] %v560
      %720 = vst [vmem:[%s689] ss:$9 sm:$0xff] %v563
      %721 = vst [vmem:[%s691] ss:$9 sm:$0xff] %v464
      %722 = vst [vmem:[%s693] ss:$9 sm:$0xff] %v568
      %723 = vst [vmem:[%s695] ss:$9 sm:$0xff] %v571
      %v724 = vld [vmem:[#allocation1] sm:$0xff]
      %725 = vst [vmem:[#allocation1] ss:$9 sm:$0xff] %v573
      %726 = vst [vmem:[%s683] ss:$9 sm:$0xff] %v576
      %727 = vst [vmem:[%s685] ss:$9 sm:$0xff] %v579
      %728 = vst [vmem:[%s687] ss:$9 sm:$0xff] %v581
      %729 = vst [vmem:[%s689] ss:$9 sm:$0xff] %v584
      %730 = vst [vmem:[%s691] ss:$9 sm:$0xff] %v467
      %731 = vst [vmem:[%s693] ss:$9 sm:$0xff] %v589
      %732 = vst [vmem:[%s695] ss:$9 sm:$0xff] %v592
      %v733 = vld [vmem:[#allocation1] sm:$0xff]
      %734 = vst [vmem:[#allocation1] ss:$9 sm:$0xff] %v594
      %735 = vst [vmem:[%s683] ss:$9 sm:$0xff] %v597
      %736 = vst [vmem:[%s685] ss:$9 sm:$0xff] %v600
      %737 = vst [vmem:[%s687] ss:$9 sm:$0xff] %v602
      %738 = vst [vmem:[%s689] ss:$9 sm:$0xff] %v605
      %739 = vst [vmem:[%s691] ss:$9 sm:$0xff] %v470
      %740 = vst [vmem:[%s693] ss:$9 sm:$0xff] %v610
      %741 = vst [vmem:[%s695] ss:$9 sm:$0xff] %v613
      %v742 = vld [vmem:[#allocation1] sm:$0xff]
      %743 = vrot.lane.b32.xlu0 %v697, 32
      %v744 = vpop.permute.xlu0 %743
      %745 = vrot.lane.b32.xlu0 %v706, 32
      %v746 = vpop.permute.xlu0 %745
      %747 = vrot.lane.b32.xlu0 %v715, 32
      %v748 = vpop.permute.xlu0 %747
      %749 = vrot.lane.b32.xlu0 %v724, 32
      %v750 = vpop.permute.xlu0 %749
      %751 = vrot.lane.b32.xlu0 %v733, 32
      %v752 = vpop.permute.xlu0 %751
      %753 = vrot.lane.b32.xlu0 %v742, 32
      %v754 = vpop.permute.xlu0 %753
      %761 = vst [vmem:[#allocation1] ss:$9 sm:$0xff] %v490
      %s762 = scalar_lea.vmem [#allocation1], 1
      %763 = vst [vmem:[%s762] ss:$9 sm:$0xff] %v493
      %s764 = scalar_lea.vmem [#allocation1], 2
      %765 = vst [vmem:[%s764] ss:$9 sm:$0xff] %v454
      %s766 = scalar_lea.vmem [#allocation1], 3
      %767 = vst [vmem:[%s766] ss:$9 sm:$0xff] %v498
      %s768 = scalar_lea.vmem [#allocation1], 4
      %769 = vst [vmem:[%s768] ss:$9 sm:$0xff] %v501
      %s770 = scalar_lea.vmem [#allocation1], 5
      %771 = vst [vmem:[%s770] ss:$9 sm:$0xff] %v503
      %s772 = scalar_lea.vmem [#allocation1], 6
      %773 = vst [vmem:[%s772] ss:$9 sm:$0xff] %v506
      %s774 = scalar_lea.vmem [#allocation1], 7
      %775 = vst [vmem:[%s774] ss:$9 sm:$0xff] %v509
      %v776 = vld [vmem:[#allocation1] sm:$0xff]
      %777 = vst [vmem:[#allocation1] ss:$9 sm:$0xff] %v511
      %778 = vst [vmem:[%s762] ss:$9 sm:$0xff] %v514
      %779 = vst [vmem:[%s764] ss:$9 sm:$0xff] %v457
      %780 = vst [vmem:[%s766] ss:$9 sm:$0xff] %v519
      %781 = vst [vmem:[%s768] ss:$9 sm:$0xff] %v522
      %782 = vst [vmem:[%s770] ss:$9 sm:$0xff] %v524
      %783 = vst [vmem:[%s772] ss:$9 sm:$0xff] %v527
      %784 = vst [vmem:[%s774] ss:$9 sm:$0xff] %v530
      %v785 = vld [vmem:[#allocation1] sm:$0xff]
      %786 = vst [vmem:[#allocation1] ss:$9 sm:$0xff] %v532
      %787 = vst [vmem:[%s762] ss:$9 sm:$0xff] %v535
      %788 = vst [vmem:[%s764] ss:$9 sm:$0xff] %v460
      %789 = vst [vmem:[%s766] ss:$9 sm:$0xff] %v540
      %790 = vst [vmem:[%s768] ss:$9 sm:$0xff] %v543
      %791 = vst [vmem:[%s770] ss:$9 sm:$0xff] %v545
      %792 = vst [vmem:[%s772] ss:$9 sm:$0xff] %v548
      %793 = vst [vmem:[%s774] ss:$9 sm:$0xff] %v551
      %v794 = vld [vmem:[#allocation1] sm:$0xff]
      %795 = vst [vmem:[#allocation1] ss:$9 sm:$0xff] %v553
      %796 = vst [vmem:[%s762] ss:$9 sm:$0xff] %v556
      %797 = vst [vmem:[%s764] ss:$9 sm:$0xff] %v463
      %798 = vst [vmem:[%s766] ss:$9 sm:$0xff] %v561
      %799 = vst [vmem:[%s768] ss:$9 sm:$0xff] %v564
      %800 = vst [vmem:[%s770] ss:$9 sm:$0xff] %v566
      %801 = vst [vmem:[%s772] ss:$9 sm:$0xff] %v569
      %802 = vst [vmem:[%s774] ss:$9 sm:$0xff] %v572
      %v803 = vld [vmem:[#allocation1] sm:$0xff]
      %804 = vst [vmem:[#allocation1] ss:$9 sm:$0xff] %v574
      %805 = vst [vmem:[%s762] ss:$9 sm:$0xff] %v577
      %806 = vst [vmem:[%s764] ss:$9 sm:$0xff] %v466
      %807 = vst [vmem:[%s766] ss:$9 sm:$0xff] %v582
      %808 = vst [vmem:[%s768] ss:$9 sm:$0xff] %v585
      %809 = vst [vmem:[%s770] ss:$9 sm:$0xff] %v587
      %810 = vst [vmem:[%s772] ss:$9 sm:$0xff] %v590
      %811 = vst [vmem:[%s774] ss:$9 sm:$0xff] %v593
      %v812 = vld [vmem:[#allocation1] sm:$0xff]
      %813 = vst [vmem:[#allocation1] ss:$9 sm:$0xff] %v595
      %814 = vst [vmem:[%s762] ss:$9 sm:$0xff] %v598
      %815 = vst [vmem:[%s764] ss:$9 sm:$0xff] %v469
      %816 = vst [vmem:[%s766] ss:$9 sm:$0xff] %v603
      %817 = vst [vmem:[%s768] ss:$9 sm:$0xff] %v606
      %818 = vst [vmem:[%s770] ss:$9 sm:$0xff] %v608
      %819 = vst [vmem:[%s772] ss:$9 sm:$0xff] %v611
      %820 = vst [vmem:[%s774] ss:$9 sm:$0xff] %v614
      %v821 = vld [vmem:[#allocation1] sm:$0xff]
      %822 = vrot.lane.b32.xlu0 %v776, 64
      %v823 = vpop.permute.xlu0 %822
      %824 = vrot.lane.b32.xlu0 %v785, 64
      %v825 = vpop.permute.xlu0 %824
      %826 = vrot.lane.b32.xlu0 %v794, 64
      %v827 = vpop.permute.xlu0 %826
      %828 = vrot.lane.b32.xlu0 %v803, 64
      %v829 = vpop.permute.xlu0 %828
      %830 = vrot.lane.b32.xlu0 %v812, 64
      %v831 = vpop.permute.xlu0 %830
      %832 = vrot.lane.b32.xlu0 %v821, 64
      %v833 = vpop.permute.xlu0 %832
      %vm840 = vcmask 261120
      %v841 = vsel %vm840, %v630, %v744
      %v842 = vsel %vm840, %v639, %v746
      %v843 = vsel %vm840, %v648, %v748
      %v844 = vsel %vm840, %v657, %v750
      %v845 = vsel %vm840, %v666, %v752
      %v846 = vsel %vm840, %v675, %v754
      %vm847 = vcmask 523264
      %v848 = vsel %vm847, %v841, %v823
      %v849 = vsel %vm847, %v842, %v825
      %v850 = vsel %vm847, %v843, %v827
      %v851 = vsel %vm847, %v844, %v829
      %v852 = vsel %vm847, %v845, %v831
      %v853 = vsel %vm847, %v846, %v833
      %v860 = vrot.slane %v848, 1
      %v861 = vrot.slane %v848, 2
      %v862 = vrot.slane %v848, 3
      %v863 = vrot.slane %v848, 4
      %v864 = vrot.slane %v848, 5
      %v865 = vrot.slane %v848, 6
      %v866 = vrot.slane %v848, 7
      %v867 = vrot.slane %v849, 1
      %v868 = vrot.slane %v849, 2
      %v869 = vrot.slane %v849, 3
      %v870 = vrot.slane %v849, 4
      %v871 = vrot.slane %v849, 5
      %v872 = vrot.slane %v849, 6
      %v873 = vrot.slane %v849, 7
      %v874 = vrot.slane %v850, 1
      %v875 = vrot.slane %v850, 2
      %v876 = vrot.slane %v850, 3
      %v877 = vrot.slane %v850, 4
      %v878 = vrot.slane %v850, 5
      %v879 = vrot.slane %v850, 6
      %v880 = vrot.slane %v850, 7
      %v881 = vrot.slane %v851, 1
      %v882 = vrot.slane %v851, 2
      %v883 = vrot.slane %v851, 3
      %v884 = vrot.slane %v851, 4
      %v885 = vrot.slane %v851, 5
      %v886 = vrot.slane %v851, 6
      %v887 = vrot.slane %v851, 7
      %v888 = vrot.slane %v852, 1
      %v889 = vrot.slane %v852, 2
      %v890 = vrot.slane %v852, 3
      %v891 = vrot.slane %v852, 4
      %v892 = vrot.slane %v852, 5
      %v893 = vrot.slane %v852, 6
      %v894 = vrot.slane %v852, 7
      %v895 = vrot.slane %v853, 1
      %v896 = vrot.slane %v853, 2
      %v897 = vrot.slane %v853, 3
      %v898 = vrot.slane %v853, 4
      %v899 = vrot.slane %v853, 5
      %v900 = vrot.slane %v853, 6
      %v901 = vrot.slane %v853, 7
      %902 = vst [vmem:[#allocation1] ss:$9 sm:$0xff] %v848
      %s903 = scalar_lea.vmem [#allocation1], 1
      %904 = vst [vmem:[%s903] ss:$9 sm:$0xff] %v862
      %s905 = scalar_lea.vmem [#allocation1], 2
      %906 = vst [vmem:[%s905] ss:$9 sm:$0xff] %v865
      %s907 = scalar_lea.vmem [#allocation1], 3
      %908 = vst [vmem:[%s907] ss:$9 sm:$0xff] %v867
      %s909 = scalar_lea.vmem [#allocation1], 4
      %910 = vst [vmem:[%s909] ss:$9 sm:$0xff] %v870
      %s911 = scalar_lea.vmem [#allocation1], 5
      %912 = vst [vmem:[%s911] ss:$9 sm:$0xff] %v873
      %s913 = scalar_lea.vmem [#allocation1], 6
      %914 = vst [vmem:[%s913] ss:$9 sm:$0xff] %v875
      %s915 = scalar_lea.vmem [#allocation1], 7
      %916 = vst [vmem:[%s915] ss:$9 sm:$0xff] %v878
      %v917 = vld [vmem:[#allocation1] sm:$0xff]
      %918 = vst [vmem:[#allocation1] ss:$9 sm:$0xff] %v851
      %919 = vst [vmem:[%s903] ss:$9 sm:$0xff] %v883
      %920 = vst [vmem:[%s905] ss:$9 sm:$0xff] %v886
      %921 = vst [vmem:[%s907] ss:$9 sm:$0xff] %v888
      %922 = vst [vmem:[%s909] ss:$9 sm:$0xff] %v891
      %923 = vst [vmem:[%s911] ss:$9 sm:$0xff] %v894
      %924 = vst [vmem:[%s913] ss:$9 sm:$0xff] %v896
      %925 = vst [vmem:[%s915] ss:$9 sm:$0xff] %v899
      %v926 = vld [vmem:[#allocation1] sm:$0xff]
      %929 = vst [vmem:[#allocation1] ss:$9 sm:$0xff] %v860
      %s930 = scalar_lea.vmem [#allocation1], 1
      %931 = vst [vmem:[%s930] ss:$9 sm:$0xff] %v863
      %s932 = scalar_lea.vmem [#allocation1], 2
      %933 = vst [vmem:[%s932] ss:$9 sm:$0xff] %v866
      %s934 = scalar_lea.vmem [#allocation1], 3
      %935 = vst [vmem:[%s934] ss:$9 sm:$0xff] %v868
      %s936 = scalar_lea.vmem [#allocation1], 4
      %937 = vst [vmem:[%s936] ss:$9 sm:$0xff] %v871
      %s938 = scalar_lea.vmem [#allocation1], 5
      %939 = vst [vmem:[%s938] ss:$9 sm:$0xff] %v850
      %s940 = scalar_lea.vmem [#allocation1], 6
      %941 = vst [vmem:[%s940] ss:$9 sm:$0xff] %v876
      %s942 = scalar_lea.vmem [#allocation1], 7
      %943 = vst [vmem:[%s942] ss:$9 sm:$0xff] %v879
      %v944 = vld [vmem:[#allocation1] sm:$0xff]
      %945 = vst [vmem:[#allocation1] ss:$9 sm:$0xff] %v881
      %946 = vst [vmem:[%s930] ss:$9 sm:$0xff] %v884
      %947 = vst [vmem:[%s932] ss:$9 sm:$0xff] %v887
      %948 = vst [vmem:[%s934] ss:$9 sm:$0xff] %v889
      %949 = vst [vmem:[%s936] ss:$9 sm:$0xff] %v892
      %950 = vst [vmem:[%s938] ss:$9 sm:$0xff] %v853
      %951 = vst [vmem:[%s940] ss:$9 sm:$0xff] %v897
      %952 = vst [vmem:[%s942] ss:$9 sm:$0xff] %v900
      %v953 = vld [vmem:[#allocation1] sm:$0xff]
      %954 = vrot.lane.b32.xlu0 %v944, 96
      %v955 = vpop.permute.xlu0 %954
      %956 = vrot.lane.b32.xlu0 %v953, 96
      %v957 = vpop.permute.xlu0 %956
      %960 = vst [vmem:[#allocation1] ss:$9 sm:$0xff] %v861
      %s961 = scalar_lea.vmem [#allocation1], 1
      %962 = vst [vmem:[%s961] ss:$9 sm:$0xff] %v864
      %s963 = scalar_lea.vmem [#allocation1], 2
      %964 = vst [vmem:[%s963] ss:$9 sm:$0xff] %v849
      %s965 = scalar_lea.vmem [#allocation1], 3
      %966 = vst [vmem:[%s965] ss:$9 sm:$0xff] %v869
      %s967 = scalar_lea.vmem [#allocation1], 4
      %968 = vst [vmem:[%s967] ss:$9 sm:$0xff] %v872
      %s969 = scalar_lea.vmem [#allocation1], 5
      %970 = vst [vmem:[%s969] ss:$9 sm:$0xff] %v874
      %s971 = scalar_lea.vmem [#allocation1], 6
      %972 = vst [vmem:[%s971] ss:$9 sm:$0xff] %v877
      %s973 = scalar_lea.vmem [#allocation1], 7
      %974 = vst [vmem:[%s973] ss:$9 sm:$0xff] %v880
      %v975 = vld [vmem:[#allocation1] sm:$0xff]
      %976 = vst [vmem:[#allocation1] ss:$9 sm:$0xff] %v882
      %977 = vst [vmem:[%s961] ss:$9 sm:$0xff] %v885
      %978 = vst [vmem:[%s963] ss:$9 sm:$0xff] %v852
      %979 = vst [vmem:[%s965] ss:$9 sm:$0xff] %v890
      %980 = vst [vmem:[%s967] ss:$9 sm:$0xff] %v893
      %981 = vst [vmem:[%s969] ss:$9 sm:$0xff] %v895
      %982 = vst [vmem:[%s971] ss:$9 sm:$0xff] %v898
      %983 = vst [vmem:[%s973] ss:$9 sm:$0xff] %v901
      %v984 = vld [vmem:[#allocation1] sm:$0xff]
      %985 = vrot.lane.b32.xlu0 %v975, 64
      %v986 = vpop.permute.xlu0 %985
      %987 = vrot.lane.b32.xlu0 %v984, 64
      %v988 = vpop.permute.xlu0 %987
      %vm991 = vcmask 785408
      %v992 = vsel %vm991, %v917, %v955
      %v993 = vsel %vm991, %v926, %v957
      %v994 = vsel %vm847, %v955, %v986
      %v995 = vsel %vm847, %v957, %v988
      %v996 = vpack.c.bf16 %v993, %v992
      %v997 = vpack.c.bf16 %v995, %v994
      %v998 = vpack.c.bf16 %v988, %v986
      %v999 = vld [vmem:[%s3] sm:$0xf]
      %v1000 = vld [vmem:[%s3 + $0x4] sm:$0xf]
      %v1001 = vld [vmem:[%s3 + $0x8] sm:$0xf]
      %v1002 = vld [vmem:[%s3 + $0xc] sm:$0xf]
      %v1003 = vld [vmem:[%s3 + $0x10] sm:$0xf]
      %v1004 = vld [vmem:[%s3 + $0x14] sm:$0xf]
      %v1005 = vld [vmem:[%s3 + $0x18] sm:$0xf]
      %v1006 = vld [vmem:[%s3 + $0x1c] sm:$0xf]
      %v1007 = vld [vmem:[%s3 + $0x20] sm:$0xf]
      %v1008 = vld [vmem:[%s3 + $0x24] sm:$0xf]
      %v1009 = vld [vmem:[%s3 + $0x28] sm:$0xf]
      %v1010 = vld [vmem:[%s3 + $0x2c] sm:$0xf]
      %v1011 = vld [vmem:[%s3 + $0x30] sm:$0xf]
      %v1012 = vld [vmem:[%s3 + $0x34] sm:$0xf]
      %v1013 = vld [vmem:[%s3 + $0x38] sm:$0xf]
      %v1014 = vld [vmem:[%s3 + $0x3c] sm:$0xf]
      %v1015 = vld [vmem:[%s3 + $0x40] sm:$0xf]
      %v1016 = vld [vmem:[%s3 + $0x44] sm:$0xf]
      %v1017 = vld [vmem:[%s3 + $0x48] sm:$0xf]
      %v1018 = vld [vmem:[%s3 + $0x4c] sm:$0xf]
      %v1019 = vld [vmem:[%s3 + $0x50] sm:$0xf]
      %v1020 = vld [vmem:[%s3 + $0x54] sm:$0xf]
      %v1021 = vld [vmem:[%s3 + $0x58] sm:$0xf]
      %v1022 = vld [vmem:[%s3 + $0x5c] sm:$0xf]
      %v1023 = vld [vmem:[%s3 + $0x60] sm:$0xf]
      %v1024 = vld [vmem:[%s3 + $0x64] sm:$0xf]
      %v1025 = vld [vmem:[%s3 + $0x68] sm:$0xf]
      %v1026 = vld [vmem:[%s3 + $0x6c] sm:$0xf]
      %v1027 = vld [vmem:[%s3 + $0x70] sm:$0xf]
      %v1028 = vld [vmem:[%s3 + $0x74] sm:$0xf]
      %v1029 = vld [vmem:[%s3 + $0x78] sm:$0xf]
      %v1030 = vld [vmem:[%s3 + $0x7c] sm:$0xf]
      %v1031 = vld [vmem:[%s3 + $0x80] sm:$0xf]
      %v1032 = vld [vmem:[%s3 + $0x84] sm:$0xf]
      %v1033 = vld [vmem:[%s3 + $0x88] sm:$0xf]
      %v1034 = vld [vmem:[%s3 + $0x8c] sm:$0xf]
      %v1035 = vld [vmem:[%s4] sm:$0x1]
      %v1037 = vperm.slane %v1035, 0
      %v1075 = vunpack.c.l.b16 %v999
      %v1076 = vunpack.c.l.b16 %v1000
      %v1077 = vunpack.c.l.b16 %v1001
      %v1078 = vunpack.c.l.b16 %v1002
      %v1079 = vunpack.c.l.b16 %v1003
      %v1080 = vunpack.c.l.b16 %v1004
      %v1081 = vunpack.c.l.b16 %v1005
      %v1082 = vunpack.c.l.b16 %v1006
      %v1083 = vunpack.c.l.b16 %v1007
      %v1084 = vunpack.c.l.b16 %v1008
      %v1085 = vunpack.c.l.b16 %v1009
      %v1086 = vunpack.c.l.b16 %v1010
      %v1087 = vunpack.c.l.b16 %v1011
      %v1088 = vunpack.c.l.b16 %v1012
      %v1089 = vunpack.c.l.b16 %v1013
      %v1090 = vunpack.c.l.b16 %v1014
      %v1091 = vunpack.c.l.b16 %v1015
      %v1092 = vunpack.c.l.b16 %v1016
      %v1093 = vunpack.c.l.b16 %v1017
      %v1094 = vunpack.c.l.b16 %v1018
      %v1095 = vunpack.c.l.b16 %v1019
      %v1096 = vunpack.c.l.b16 %v1020
      %v1097 = vunpack.c.l.b16 %v1021
      %v1098 = vunpack.c.l.b16 %v1022
      %v1099 = vunpack.c.l.b16 %v1023
      %v1100 = vunpack.c.l.b16 %v1024
      %v1101 = vunpack.c.l.b16 %v1025
      %v1102 = vunpack.c.l.b16 %v1026
      %v1103 = vunpack.c.l.b16 %v1027
      %v1104 = vunpack.c.l.b16 %v1028
      %v1105 = vunpack.c.l.b16 %v1029
      %v1106 = vunpack.c.l.b16 %v1030
      %v1107 = vunpack.c.l.b16 %v1031
      %v1108 = vunpack.c.l.b16 %v1032
      %v1109 = vunpack.c.l.b16 %v1033
      %v1110 = vunpack.c.l.b16 %v1034
      %v1111 = vpack.c.b16 %v1076, %v1075
      %v1112 = vpack.c.b16 %v1078, %v1077
      %v1113 = vpack.c.b16 %v1080, %v1079
      %v1114 = vpack.c.b16 %v1082, %v1081
      %v1115 = vpack.c.b16 %v1084, %v1083
      %v1116 = vpack.c.b16 %v1086, %v1085
      %v1117 = vpack.c.b16 %v1088, %v1087
      %v1118 = vpack.c.b16 %v1090, %v1089
      %v1119 = vpack.c.b16 %v1092, %v1091
      %v1120 = vpack.c.b16 %v1094, %v1093
      %v1121 = vpack.c.b16 %v1096, %v1095
      %v1122 = vpack.c.b16 %v1098, %v1097
      %v1123 = vpack.c.b16 %v1100, %v1099
      %v1124 = vpack.c.b16 %v1102, %v1101
      %v1125 = vpack.c.b16 %v1104, %v1103
      %v1126 = vpack.c.b16 %v1106, %v1105
      %v1127 = vpack.c.b16 %v1108, %v1107
      %v1128 = vpack.c.b16 %v1110, %v1109
      %v1148 = vsel %vm840, %v998, 0
      %1150 = vmatpush.bf16.msra.mxu0 %v1118
      %1151 = vmatpush.bf16.msra.mxu0 %v1117
      %1152 = vmatpush.bf16.msra.mxu0 %v1116
      %1153 = vmatpush.bf16.msra.mxu0 %v1115
      %1154 = vmatpush.bf16.msra.mxu0 %v1114
      %1155 = vmatpush.bf16.msra.mxu0 %v1113
      %1156 = vmatpush.bf16.msra.mxu0 %v1112
      %1157 = vmatpush.bf16.msra.mxu0 %v1111
      %1158 = vmatmul.bf16.gmra.mxu0 %v996
      %v1159 = vpop.f32.mrf.mxu0
      %v1160 = vadd.f32 %v1037, %v1159
      %v1161 = vpop.f32.mrf.mxu0
      %v1162 = vadd.f32 %v1037, %v1161
      %1163 = vdwg.mxu0
      %1164 = vmatpush.bf16.msra.mxu0 %v1126
      %1165 = vmatpush.bf16.msra.mxu0 %v1125
      %1166 = vmatpush.bf16.msra.mxu0 %v1124
      %1167 = vmatpush.bf16.msra.mxu0 %v1123
      %1168 = vmatpush.bf16.msra.mxu0 %v1122
      %1169 = vmatpush.bf16.msra.mxu0 %v1121
      %1170 = vmatpush.bf16.msra.mxu0 %v1120
      %1171 = vmatpush.bf16.msra.mxu0 %v1119
      %1172 = vmatmul.bf16.gmra.mxu0 %v997
      %v1173 = vpop.f32.mrf.mxu0
      %v1174 = vadd.f32 %v1160, %v1173
      %v1175 = vpop.f32.mrf.mxu0
      %v1176 = vadd.f32 %v1162, %v1175
      %1177 = vdwg.mxu0
      %1178 = vmatpush.bf16.msra.mxu0 0
      %1179 = vmatpush.bf16.msra.mxu0 0
      %1180 = vmatpush.bf16.msra.mxu0 0
      %1181 = vmatpush.bf16.msra.mxu0 0
      %1182 = vmatpush.bf16.msra.mxu0 0
      %1183 = vmatpush.bf16.msra.mxu0 0
      %1184 = vmatpush.bf16.msra.mxu0 %v1128
      %1185 = vmatpush.bf16.msra.mxu0 %v1127
      %1186 = vmatmul.bf16.gmra.mxu0 %v1148
      %v1187 = vpop.f32.mrf.mxu0
      %v1188 = vadd.f32 %v1174, %v1187
      %v1189 = vpop.f32.mrf.mxu0
      %v1190 = vadd.f32 %v1176, %v1189
      %1191 = vdwg.mxu0
      %v1192 = vmax.f32 %v1188, 0.0
      %v1193 = vmax.f32 %v1190, 0.0
      %v1196 = vrot.slane %v1192, 4
      %v1197 = vrot.slane %v1193, 4
      %1198 = vst [vmem:[#allocation1] ss:$2 sm:$0xff] %v1192
      %v1199 = vld.sshfl [vmem:[#allocation1] sm:$0xff pattern:$0x75316420]
      %s1200 = scalar_lea.vmem [#allocation1], 16
      %1201 = vst [vmem:[%s1200] ss:$2 sm:$0xff] %v1196
      %v1202 = vld.sshfl [vmem:[#allocation1 + $0x10] sm:$0xff pattern:$0x75316420]
      %s1203 = scalar_lea.vmem [#allocation1], 32
      %1204 = vst [vmem:[%s1203] ss:$2 sm:$0xff] %v1193
      %v1205 = vld.sshfl [vmem:[#allocation1 + $0x20] sm:$0xff pattern:$0x75316420]
      %s1206 = scalar_lea.vmem [#allocation1], 48
      %1207 = vst [vmem:[%s1206] ss:$2 sm:$0xff] %v1197
      %v1208 = vld.sshfl [vmem:[#allocation1 + $0x30] sm:$0xff pattern:$0x75316420]
      %v1209 = vrot.slane %v1199, 7
      %v1210 = vrot.slane %v1202, 7
      %v1211 = vrot.slane %v1205, 7
      %v1212 = vrot.slane %v1208, 7
      %vm1217 = vcmask 1040384
      %v1218 = vsel %vm1217, 0.0, %v1209
      %v1219 = vsel %vm1217, 0.0, %v1210
      %v1220 = vsel %vm1217, 0.0, %v1211
      %v1221 = vsel %vm1217, 0.0, %v1212
      %vm1222 = vcmask 1044480
      %v1223 = vsel %vm1222, %v1218, 0.0
      %v1224 = vsel %vm1222, %v1219, 0.0
      %v1225 = vsel %vm1222, %v1220, 0.0
      %v1226 = vsel %vm1222, %v1221, 0.0
      %v1232 = vrot.slane 0.0, 1
      %v1233 = vrot.slane %v1223, 1
      %v1234 = vrot.slane %v1224, 1
      %v1235 = vrot.slane %v1225, 1
      %v1236 = vrot.slane %v1226, 1
      %1237 = vrot.lane.b32.xlu0 %v1232, 32
      %v1238 = vpop.permute.xlu0 %1237
      %1239 = vrot.lane.b32.xlu0 %v1233, 32
      %v1240 = vpop.permute.xlu0 %1239
      %1241 = vrot.lane.b32.xlu0 %v1234, 32
      %v1242 = vpop.permute.xlu0 %1241
      %1243 = vrot.lane.b32.xlu0 %v1235, 32
      %v1244 = vpop.permute.xlu0 %1243
      %1245 = vrot.lane.b32.xlu0 %v1236, 32
      %v1246 = vpop.permute.xlu0 %1245
      %v1252 = vrot.slane 0.0, 2
      %v1253 = vrot.slane %v1223, 2
      %v1254 = vrot.slane %v1224, 2
      %v1255 = vrot.slane %v1225, 2
      %v1256 = vrot.slane %v1226, 2
      %1257 = vrot.lane.b32.xlu0 %v1252, 64
      %v1258 = vpop.permute.xlu0 %1257
      %1259 = vrot.lane.b32.xlu0 %v1253, 64
      %v1260 = vpop.permute.xlu0 %1259
      %1261 = vrot.lane.b32.xlu0 %v1254, 64
      %v1262 = vpop.permute.xlu0 %1261
      %1263 = vrot.lane.b32.xlu0 %v1255, 64
      %v1264 = vpop.permute.xlu0 %1263
      %1265 = vrot.lane.b32.xlu0 %v1256, 64
      %v1266 = vpop.permute.xlu0 %1265
      %v1272 = vsel %vm840, 0.0, %v1238
      %v1273 = vsel %vm840, %v1223, %v1240
      %v1274 = vsel %vm840, %v1224, %v1242
      %v1275 = vsel %vm840, %v1225, %v1244
      %v1276 = vsel %vm840, %v1226, %v1246
      %v1277 = vsel %vm847, %v1272, %v1258
      %v1278 = vsel %vm847, %v1273, %v1260
      %v1279 = vsel %vm847, %v1274, %v1262
      %v1280 = vsel %vm847, %v1275, %v1264
      %v1281 = vsel %vm847, %v1276, %v1266
      %1286 = vrot.lane.b32.xlu0 %v1278, 96
      %v1287 = vpop.permute.xlu0 %1286
      %1288 = vrot.lane.b32.xlu0 %v1279, 96
      %v1289 = vpop.permute.xlu0 %1288
      %1290 = vrot.lane.b32.xlu0 %v1280, 96
      %v1291 = vpop.permute.xlu0 %1290
      %1292 = vrot.lane.b32.xlu0 %v1281, 96
      %v1293 = vpop.permute.xlu0 %1292
      %1299 = vrot.lane.b32.xlu0 %v1279, 64
      %v1300 = vpop.permute.xlu0 %1299
      %1301 = vrot.lane.b32.xlu0 %v1280, 64
      %v1302 = vpop.permute.xlu0 %1301
      %1303 = vrot.lane.b32.xlu0 %v1281, 64
      %v1304 = vpop.permute.xlu0 %1303
      %1305 = vrot.lane.b32.xlu0 %v1277, 64
      %v1306 = vpop.permute.xlu0 %1305
      %v1311 = vsel %vm991, %v1277, %v1287
      %v1312 = vsel %vm991, %v1278, %v1289
      %v1313 = vsel %vm991, %v1279, %v1291
      %v1314 = vsel %vm991, %v1280, %v1293
      %v1315 = vsel %vm847, %v1287, %v1300
      %v1316 = vsel %vm847, %v1289, %v1302
      %v1317 = vsel %vm847, %v1291, %v1304
      %v1318 = vsel %vm847, %v1293, %v1306
      %v1327 = vrot.slane %v1315, 4
      %v1328 = vrot.slane %v1316, 4
      %v1329 = vrot.slane %v1317, 4
      %v1330 = vrot.slane %v1318, 4
      %vm1331 = vcmask 1043456
      %v1332 = vsel %vm1331, %v1311, %v1327
      %v1333 = vsel %vm1331, %v1312, %v1328
      %v1334 = vsel %vm1331, %v1313, %v1329
      %v1335 = vsel %vm1331, %v1314, %v1330
      %1336 = vst [vmem:[#allocation1] ss:$2 sm:$0xff] %v1332
      %s1337 = scalar_lea.vmem [#allocation1], 1
      %1338 = vst [vmem:[%s1337] ss:$2 sm:$0xff] %v1333
      %s1339 = scalar_lea.vmem [#allocation1], 16
      %1340 = vst [vmem:[%s1339] ss:$2 sm:$0xff] %v1300
      %s1341 = scalar_lea.vmem [#allocation1], 17
      %1342 = vst [vmem:[%s1341] ss:$2 sm:$0xff] %v1302
      %s1343 = scalar_lea.vmem [#allocation1], 32
      %1344 = vst [vmem:[%s1343] ss:$2 sm:$0xff] %v1334
      %s1345 = scalar_lea.vmem [#allocation1], 33
      %1346 = vst [vmem:[%s1345] ss:$2 sm:$0xff] %v1335
      %s1347 = scalar_lea.vmem [#allocation1], 48
      %1348 = vst [vmem:[%s1347] ss:$2 sm:$0xff] %v1304
      %s1349 = scalar_lea.vmem [#allocation1], 49
      %1350 = vst [vmem:[%s1349] ss:$2 sm:$0xff] %v1306
      %v1351 = vld.sshfl [vmem:[#allocation1] sm:$0xff pattern:$0x75316420]
      %v1352 = vld.sshfl [vmem:[#allocation1 + $0x8] sm:$0xff pattern:$0x75316420]
      %v1353 = vld.sshfl [vmem:[#allocation1 + $0x10] sm:$0xff pattern:$0x75316420]
      %v1354 = vld.sshfl [vmem:[#allocation1 + $0x20] sm:$0xff pattern:$0x75316420]
      %v1355 = vld.sshfl [vmem:[#allocation1 + $0x28] sm:$0xff pattern:$0x75316420]
      %v1356 = vld.sshfl [vmem:[#allocation1 + $0x30] sm:$0xff pattern:$0x75316420]
      %v1363 = vpack.c.bf16 %v1354, %v1351
      %v1364 = vpack.c.bf16 %v1355, %v1352
      %v1365 = vpack.c.bf16 %v1356, %v1353
      %v1366 = vld [vmem:[%s5] sm:$0xf]
      %v1367 = vld [vmem:[%s5 + $0x4] sm:$0xf]
      %v1368 = vld [vmem:[%s5 + $0x8] sm:$0xf]
      %v1369 = vld [vmem:[%s5 + $0xc] sm:$0xf]
      %v1370 = vld [vmem:[%s5 + $0x10] sm:$0xf]
      %v1371 = vld [vmem:[%s5 + $0x14] sm:$0xf]
      %v1372 = vld [vmem:[%s5 + $0x18] sm:$0xf]
      %v1373 = vld [vmem:[%s5 + $0x1c] sm:$0xf]
      %v1374 = vld [vmem:[%s5 + $0x20] sm:$0xf]
      %v1375 = vld [vmem:[%s5 + $0x24] sm:$0xf]
      %v1376 = vld [vmem:[%s5 + $0x28] sm:$0xf]
      %v1377 = vld [vmem:[%s5 + $0x2c] sm:$0xf]
      %v1378 = vld [vmem:[%s5 + $0x30] sm:$0xf]
      %v1379 = vld [vmem:[%s5 + $0x34] sm:$0xf]
      %v1380 = vld [vmem:[%s5 + $0x38] sm:$0xf]
      %v1381 = vld [vmem:[%s5 + $0x3c] sm:$0xf]
      %v1382 = vld [vmem:[%s5 + $0x40] sm:$0xf]
      %v1383 = vld [vmem:[%s5 + $0x44] sm:$0xf]
      %v1384 = vld [vmem:[%s5 + $0x48] sm:$0xf]
      %v1385 = vld [vmem:[%s5 + $0x4c] sm:$0xf]
      %v1386 = vld [vmem:[%s5 + $0x50] sm:$0xf]
      %v1387 = vld [vmem:[%s5 + $0x54] sm:$0xf]
      %v1388 = vld [vmem:[%s5 + $0x58] sm:$0xf]
      %v1389 = vld [vmem:[%s5 + $0x5c] sm:$0xf]
      %v1390 = vld [vmem:[%s5 + $0x60] sm:$0xf]
      %v1391 = vld [vmem:[%s5 + $0x64] sm:$0xf]
      %v1392 = vld [vmem:[%s5 + $0x68] sm:$0xf]
      %v1393 = vld [vmem:[%s5 + $0x6c] sm:$0xf]
      %v1394 = vld [vmem:[%s5 + $0x70] sm:$0xf]
      %v1395 = vld [vmem:[%s5 + $0x74] sm:$0xf]
      %v1396 = vld [vmem:[%s5 + $0x78] sm:$0xf]
      %v1397 = vld [vmem:[%s5 + $0x7c] sm:$0xf]
      %v1398 = vld [vmem:[%s5 + $0x80] sm:$0xf]
      %v1399 = vld [vmem:[%s5 + $0x84] sm:$0xf]
      %v1400 = vld [vmem:[%s5 + $0x88] sm:$0xf]
      %v1401 = vld [vmem:[%s5 + $0x8c] sm:$0xf]
      %v1402 = vld [vmem:[%s6] sm:$0x1]
      %v1404 = vperm.slane %v1402, 0
      %v1442 = vunpack.c.l.b16 %v1366
      %v1443 = vunpack.c.l.b16 %v1367
      %v1444 = vunpack.c.l.b16 %v1368
      %v1445 = vunpack.c.l.b16 %v1369
      %v1446 = vunpack.c.l.b16 %v1370
      %v1447 = vunpack.c.l.b16 %v1371
      %v1448 = vunpack.c.l.b16 %v1372
      %v1449 = vunpack.c.l.b16 %v1373
      %v1450 = vunpack.c.l.b16 %v1374
      %v1451 = vunpack.c.l.b16 %v1375
      %v1452 = vunpack.c.l.b16 %v1376
      %v1453 = vunpack.c.l.b16 %v1377
      %v1454 = vunpack.c.l.b16 %v1378
      %v1455 = vunpack.c.l.b16 %v1379
      %v1456 = vunpack.c.l.b16 %v1380
      %v1457 = vunpack.c.l.b16 %v1381
      %v1458 = vunpack.c.l.b16 %v1382
      %v1459 = vunpack.c.l.b16 %v1383
      %v1460 = vunpack.c.l.b16 %v1384
      %v1461 = vunpack.c.l.b16 %v1385
      %v1462 = vunpack.c.l.b16 %v1386
      %v1463 = vunpack.c.l.b16 %v1387
      %v1464 = vunpack.c.l.b16 %v1388
      %v1465 = vunpack.c.l.b16 %v1389
      %v1466 = vunpack.c.l.b16 %v1390
      %v1467 = vunpack.c.l.b16 %v1391
      %v1468 = vunpack.c.l.b16 %v1392
      %v1469 = vunpack.c.l.b16 %v1393
      %v1470 = vunpack.c.l.b16 %v1394
      %v1471 = vunpack.c.l.b16 %v1395
      %v1472 = vunpack.c.l.b16 %v1396
      %v1473 = vunpack.c.l.b16 %v1397
      %v1474 = vunpack.c.l.b16 %v1398
      %v1475 = vunpack.c.l.b16 %v1399
      %v1476 = vunpack.c.l.b16 %v1400
      %v1477 = vunpack.c.l.b16 %v1401
      %v1478 = vpack.c.b16 %v1443, %v1442
      %v1479 = vpack.c.b16 %v1445, %v1444
      %v1480 = vpack.c.b16 %v1447, %v1446
      %v1481 = vpack.c.b16 %v1449, %v1448
      %v1482 = vpack.c.b16 %v1451, %v1450
      %v1483 = vpack.c.b16 %v1453, %v1452
      %v1484 = vpack.c.b16 %v1455, %v1454
      %v1485 = vpack.c.b16 %v1457, %v1456
      %v1486 = vpack.c.b16 %v1459, %v1458
      %v1487 = vpack.c.b16 %v1461, %v1460
      %v1488 = vpack.c.b16 %v1463, %v1462
      %v1489 = vpack.c.b16 %v1465, %v1464
      %v1490 = vpack.c.b16 %v1467, %v1466
      %v1491 = vpack.c.b16 %v1469, %v1468
      %v1492 = vpack.c.b16 %v1471, %v1470
      %v1493 = vpack.c.b16 %v1473, %v1472
      %v1494 = vpack.c.b16 %v1475, %v1474
      %v1495 = vpack.c.b16 %v1477, %v1476
      %v1515 = vsel %vm840, %v1365, 0
      %1517 = vmatpush.bf16.msra.mxu0 %v1485
      %1518 = vmatpush.bf16.msra.mxu0 %v1484
      %1519 = vmatpush.bf16.msra.mxu0 %v1483
      %1520 = vmatpush.bf16.msra.mxu0 %v1482
      %1521 = vmatpush.bf16.msra.mxu0 %v1481
      %1522 = vmatpush.bf16.msra.mxu0 %v1480
      %1523 = vmatpush.bf16.msra.mxu0 %v1479
      %1524 = vmatpush.bf16.msra.mxu0 %v1478
      %1525 = vmatmul.bf16.gmra.mxu0 %v1363
      %v1526 = vpop.f32.mrf.mxu0
      %v1527 = vadd.f32 %v1404, %v1526
      %v1528 = vpop.f32.mrf.mxu0
      %v1529 = vadd.f32 %v1404, %v1528
      %1530 = vdwg.mxu0
      %1531 = vmatpush.bf16.msra.mxu0 %v1493
      %1532 = vmatpush.bf16.msra.mxu0 %v1492
      %1533 = vmatpush.bf16.msra.mxu0 %v1491
      %1534 = vmatpush.bf16.msra.mxu0 %v1490
      %1535 = vmatpush.bf16.msra.mxu0 %v1489
      %1536 = vmatpush.bf16.msra.mxu0 %v1488
      %1537 = vmatpush.bf16.msra.mxu0 %v1487
      %1538 = vmatpush.bf16.msra.mxu0 %v1486
      %1539 = vmatmul.bf16.gmra.mxu0 %v1364
      %v1540 = vpop.f32.mrf.mxu0
      %v1541 = vadd.f32 %v1527, %v1540
      %v1542 = vpop.f32.mrf.mxu0
      %v1543 = vadd.f32 %v1529, %v1542
      %1544 = vdwg.mxu0
      %1545 = vmatpush.bf16.msra.mxu0 0
      %1546 = vmatpush.bf16.msra.mxu0 0
      %1547 = vmatpush.bf16.msra.mxu0 0
      %1548 = vmatpush.bf16.msra.mxu0 0
      %1549 = vmatpush.bf16.msra.mxu0 0
      %1550 = vmatpush.bf16.msra.mxu0 0
      %1551 = vmatpush.bf16.msra.mxu0 %v1495
      %1552 = vmatpush.bf16.msra.mxu0 %v1494
      %1553 = vmatmul.bf16.gmra.mxu0 %v1515
      %v1554 = vpop.f32.mrf.mxu0
      %v1555 = vadd.f32 %v1541, %v1554
      %v1556 = vpop.f32.mrf.mxu0
      %v1557 = vadd.f32 %v1543, %v1556
      %1558 = vdwg.mxu0
      %vm1559 = vcmp.ge.f32.partialorder %v1555, 0.0
      %vm1560 = vcmp.ge.f32.partialorder %v1557, 0.0
      %v1561 = vmul.f32 %v1555, 0.01
      %v1562 = vmul.f32 %v1557, 0.01
      %v1563 = vsel %vm1559, %v1555, %v1561
      %v1564 = vsel %vm1560, %v1557, %v1562
      %vm1565 = vcmask 31744
      %1566 = vst.msk [vmem:[%s278] sm:$0xff] %vm1565, %v1563
      %1567 = vst.msk [vmem:[%s278 + $0x8] sm:$0xff] %vm1565, %v1564
      %p1568 = scmp.lt.s32.totalorder %s18, 1
      %s1569 = scalar_select %p1568, %s18, 1
      %s1570 = smul.addr %s1569, 2
      %s1571 = smul.addr %s1570, 8
      %s1572 = scalar_lea.vmem %s7, %s1571
      // Predicated region
      $region49: #{downsample_convnet.1} parent=47 // pred_check
        %p1573 = pneg %p188
      $region50: #{downsample_convnet.1} parent=47 // pred_check_branch
        %1575 = sbr.rel (%p1573) target = $region52
      $region51: #{downsample_convnet.1} parent=47 // pred_region
        _
      $region52: #{downsample_convnet.1} parent=47 // pred_fallthru
        _
    $region48: #{downsample_convnet.1} parent=5 // pred_fallthru
      _
    %p1576 = scmp.le.s32.totalorder 2, %s13
    // Predicated region
    $region53: #{downsample_convnet.1} parent=5 // pred_check
      %p1577 = pneg %p1576
    $region54: #{downsample_convnet.1} parent=5 // pred_check_branch
      %1579 = sbr.rel (%p1577) target = $region56
    $region55: #{downsample_convnet.1} parent=5 // pred_region
      %s1580 = ssub.s32 %s13, 2
      // Predicated region
      $region57: #{downsample_convnet.1} parent=55 // pred_check
        %p1581 = pneg %p194
      $region58: #{downsample_convnet.1} parent=55 // pred_check_branch
        %1583 = sbr.rel (%p1581) target = $region60
      $region59: #{downsample_convnet.1} parent=55 // pred_region
        %p1584 = scmp.lt.s32.totalorder %s19, 1
        %s1585 = scalar_select %p1584, %s19, 1
        %s1586 = smul.addr %s1585, 2
        %s1587 = smul.addr %s1586, 8
        %s1588 = scalar_lea.vmem %s7, %s1587
      $region60: #{downsample_convnet.1} parent=55 // pred_fallthru
        _
    $region56: #{downsample_convnet.1} parent=5 // pred_fallthru
      _
  $region6: #{downsample_convnet.1} parent=0 // loop_footer
    %s17 = sadd.s32 1, %s13
  $region7: #{downsample_convnet.1} parent=0 // loop_footer_branch
    %12 = sbr.rel target = $region3
  $region8: #{downsample_convnet.1} parent=0 // loop_exit
    _

</llo_original>
